<compile_context>
chip_gen: v5e
topology: v5e:2x2
jax: 0.10.0
libtpu: 0.0.40
codegen_flags: <defaults>
</compile_context>

<pallas_src>
import functools

import jax
import jax.numpy as jnp
from jax.experimental import pallas as pl
from jax.experimental.pallas import tpu as pltpu


def cbam_kernel(x_ref, w1t_ref, b1_ref, w2_ref, b2_ref, col_ref, wcols_ref,
                bn_ref, o_ref, pad_ref, bank_ref, *, img_w, pad_flat, row_w,
                batch_tile):
    _, C, HW = x_ref.shape
    W = img_w

    # Scratch init is UNCONDITIONAL (no pl.when on program_id): with
    # dimension_semantics=("parallel",) the batch grid is sharded across v7x's
    # two TensorCores, and a program_id==0 gate would leave one core reading
    # stale/uninitialized VMEM in the conv pad region.  Only the pads and the
    # two spare bank rows strictly need zeros; whole-buffer zeroing is a few
    # vreg stores per step.
    pad_ref[...] = jnp.zeros_like(pad_ref)
    bank_ref[...] = jnp.zeros_like(bank_ref)

    # Invariants hoisted out of the per-batch loop (loaded once per grid step).
    col = col_ref[...]                 # (1, HW) f32 column index of each flat pixel
    w1t = w1t_ref[...]                 # (C, hidden)  = W1.T
    b1r = b1_ref[...]                  # (1, hidden)
    w2 = w2_ref[...]                   # (C, hidden)  = W2 (PyTorch layout)
    b2c = b2_ref[...]                  # (C, 1)
    bn_scale = bn_ref[0]
    bn_shift = bn_ref[1]

    def mlp(vcol):
        # Channel MLP entirely on the VPU (appropriate for toy C/hidden): layer 1
        # contracts C on the sublane axis -> (1, hidden) row; layer 2 contracts
        # hidden on the lane axis -> (C, 1) column that broadcasts straight onto
        # the (C, HW) block.  No MXU round-trips, no skinny (C, 2) RHS.
        # TODO(synk): for production C (>=256) switch to the transposed MXU form
        #             hT=(2,C)@(C,hidden), zT=(2,hidden)@(hidden,C) per review.
        h = jnp.sum(w1t * vcol, axis=0, keepdims=True) + b1r      # (1, hidden)
        h = jnp.maximum(h, 0.0)
        return jnp.sum(w2 * h, axis=-1, keepdims=True) + b2c      # (C, 1)

    for bi in range(batch_tile):
        # v5e note: no bf16 VPU/EUP datapath -> all in-kernel math stays f32;
        # bf16 is only ever a storage/DMA format for x / o (cast is a no-op for
        # f32 inputs).
        xf = x_ref[bi].astype(jnp.float32)                         # (C, HW)

        # ---------------- channel attention ----------------
        avg = jnp.sum(xf, axis=-1, keepdims=True) * (1.0 / HW)     # (C, 1)
        mx = jnp.max(xf, axis=-1, keepdims=True)                   # (C, 1)
        z = mlp(avg) + mlp(mx)                                     # (C, 1)
        # exact sigmoid kept so the 1e-4 f32 tolerance holds
        a_c = 1.0 / (1.0 + jnp.exp(-z))
        # TODO(synk): at production sizes (C=512, HW=3136) stream C-chunks here
        #             (accumulate sm/sx of a_c*x) instead of materializing xc,
        #             and recompute the gate at the final store, to stay inside
        #             v7x's 64 MiB VMEM.
        xc = xf * a_c                                              # (C, HW)

        # ---------------- spatial attention ----------------
        sm = jnp.sum(xc, axis=0, keepdims=True) * (1.0 / C)        # (1, HW)
        sx = jnp.max(xc, axis=0, keepdims=True)                    # (1, HW)

        # Stage the two maps into the flat zero-padded scratch (aligned interior
        # store; 7x7-window row over/underflow lands in the zero pads).
        pad_ref[0, :, pad_flat:pad_flat + HW] = sm
        pad_ref[1, :, pad_flat:pad_flat + HW] = sx

        # dy-shifted row bank: row ch*8+dy holds the flat map pre-shifted by
        # (dy-3)*W - 3 lanes, so every conv tap column dx becomes ONE lane-offset
        # load of the whole 16-row bank with full sublane occupancy, instead of
        # 14 separate (1, HW) unaligned loads per dx (98 total before).
        # TODO(synk): a (2, H+6, Wpad) 2-D scratch + pltpu.roll per dx would also
        #             remove the column masks, but needs a (1,HW)<->(H,W) relayout
        #             of the maps in-kernel; the flat row bank keeps only proven
        #             lane-slice patterns.
        for ch in range(2):
            for dy in range(7):
                off = pad_flat + (dy - 3) * W - 3
                r = ch * 8 + dy
                bank_ref[r:r + 1, :] = pad_ref[ch, :, off:off + row_w]

        acc = jnp.zeros((1, HW), jnp.float32)
        for dx in range(7):
            blk = bank_ref[:, dx:dx + HW]             # (16, HW) single shifted load
            wcol = wcols_ref[:, dx:dx + 1]            # (16, 1) per-row tap weights
            contrib = jnp.sum(blk * wcol, axis=0, keepdims=True)   # (1, HW)
            if dx == 3:
                acc = acc + contrib                   # centre column: always valid
            else:
                # kill the column wrap-around introduced by the flat dx shift
                valid = jnp.logical_and(col >= (3.0 - dx), col < (W + 3.0 - dx))
                acc = acc + jnp.where(valid, contrib, 0.0)

        # folded inference-mode BatchNorm (scale, shift) then sigmoid
        a_s = 1.0 / (1.0 + jnp.exp(-(acc * bn_scale + bn_shift)))  # (1, HW)

        # lane-dense, unmasked output store
        o_ref[bi] = (xc * a_s).astype(o_ref.dtype)


def _round_up(v, m):
    return ((v + m - 1) // m) * m


def _pick_batch_tile(B, C, HW, itemsize):
    # Largest divisor of B whose double-buffered in+out blocks stay well under
    # VMEM, while keeping >= 2 grid steps so both v7x TensorCores get work.
    budget = 8 * 1024 * 1024
    best = 1
    for bt in range(1, B + 1):
        if B % bt:
            continue
        if B >= 2 and (B // bt) < 2:
            continue
        if 4 * bt * C * HW * itemsize > budget:   # 2 buffers x (in + out) blocks
            continue
        best = bt
    return best


@functools.partial(jax.jit, static_argnames=("eps",))
def cbam_forward(x, W1, b1, W2, b2, Wconv, bn_gamma, bn_beta, bn_mean, bn_var,
                 eps=1e-5):
    B, C, H, W = x.shape
    HW = H * W
    hidden = W1.shape[0]

    # Flat conv-scratch geometry: left pad covers the most-negative row/col shift,
    # right pad additionally covers the widest (row_w) bank row.
    row_w = _round_up(HW + 6, 128)
    pad_flat = _round_up(3 * W + 3, 128)
    pad_right = _round_up(3 * W - 3 + (row_w - HW), 128)
    buf_len = pad_flat + HW + pad_right

    bt = _pick_batch_tile(B, C, HW, x.dtype.itemsize)

    # fold BN params into scale/shift (glue, plain JAX)
    bn_scale = bn_gamma / jnp.sqrt(bn_var + eps)
    bn_shift = bn_beta - bn_mean * bn_scale
    bn = jnp.concatenate([bn_scale.reshape(1), bn_shift.reshape(1)]).astype(jnp.float32)

    # MLP weights in the orientations the VPU path wants.
    w1t = W1.T.astype(jnp.float32)                   # (C, hidden)
    b1r = b1.reshape(1, hidden).astype(jnp.float32)  # (1, hidden)
    w2c = W2.astype(jnp.float32)                     # (C, hidden)
    b2c = b2.reshape(C, 1).astype(jnp.float32)       # (C, 1)

    # Conv tap weights packed as per-dx columns over the 16 bank rows
    # (rows 0..6 = mean-channel taps, 8..14 = max-channel taps, 7/15 zero).
    wcols = jnp.zeros((16, 8), jnp.float32)
    wcols = wcols.at[0:7, 0:7].set(Wconv[0, 0].astype(jnp.float32))
    wcols = wcols.at[8:15, 0:7].set(Wconv[0, 1].astype(jnp.float32))

    # single (1, HW) column-index row replaces the old (7, HW) colmask input
    col_row = (jnp.arange(HW, dtype=jnp.int32) % W).astype(jnp.float32).reshape(1, HW)

    # lane-dense layout: (B, C, H*W) is a free reshape of contiguous NCHW and makes
    # every VPU op and the output store use all 128 lanes.  x keeps its native
    # dtype (bf16 stays bf16 on the wire; in-kernel math is f32).
    x_flat = x.reshape(B, C, HW)

    kernel = functools.partial(cbam_kernel, img_w=W, pad_flat=pad_flat,
                               row_w=row_w, batch_tile=bt)

    grid_spec = pltpu.PrefetchScalarGridSpec(
        num_scalar_prefetch=0,
        grid=(B // bt,),
        in_specs=[
            pl.BlockSpec((bt, C, HW), lambda b: (b, 0, 0)),      # x block
            pl.BlockSpec((C, hidden), lambda b: (0, 0)),         # W1.T
            pl.BlockSpec((1, hidden), lambda b: (0, 0)),         # b1 row
            pl.BlockSpec((C, hidden), lambda b: (0, 0)),         # W2
            pl.BlockSpec((C, 1), lambda b: (0, 0)),              # b2 column
            pl.BlockSpec((1, HW), lambda b: (0, 0)),             # column-index row
            pl.BlockSpec((16, 8), lambda b: (0, 0)),             # conv weight columns
            pl.BlockSpec(memory_space=pltpu.MemorySpace.SMEM),   # bn scale/shift (2,)
        ],
        out_specs=pl.BlockSpec((bt, C, HW), lambda b: (b, 0, 0)),
        scratch_shapes=[
            pltpu.VMEM((2, 1, buf_len), jnp.float32),            # flat padded maps
            pltpu.VMEM((16, row_w), jnp.float32),                # dy-shifted row bank
        ],
    )

    # Explicit scoped-VMEM limit only when the blocks actually need it (production
    # shapes); at toy sizes the default is plenty.  On v7x (64 MiB physical) prefer
    # shrinking bt / bf16 storage before raising this.
    block_bytes = bt * C * HW * x.dtype.itemsize
    scratch_bytes = (2 * buf_len + 16 * row_w) * 4
    vmem_needed = 2 * 2 * block_bytes + scratch_bytes + (1 << 20)
    vmem_limit = None
    if vmem_needed > 30 * 1024 * 1024:
        vmem_limit = min(vmem_needed, 100 * 1024 * 1024)

    out_flat = pl.pallas_call(
        kernel,
        out_shape=jax.ShapeDtypeStruct((B, C, HW), x.dtype),
        grid_spec=grid_spec,
        compiler_params=pltpu.CompilerParams(
            dimension_semantics=("parallel",),    # batch steps shard across v7x's 2 TCs
            vmem_limit_bytes=vmem_limit),
    )(x_flat, w1t, b1r, w2c, b2c, col_row, wcols, bn)

    return out_flat.reshape(B, C, H, W)


def cbam_reference(x, W1, b1, W2, b2, Wconv, bn_gamma, bn_beta, bn_mean, bn_var,
                   eps=1e-5):
    # pure-JAX reference matching the PyTorch module semantics
    avg = x.mean(axis=(2, 3))                       # (B, C)
    mx = x.max(axis=(2, 3))                         # (B, C)

    def mlp(v):
        return jax.nn.relu(v @ W1.T + b1) @ W2.T + b2

    a_c = jax.nn.sigmoid(mlp(avg) + mlp(mx))[:, :, None, None]
    xc = x * a_c

    sm = xc.mean(axis=1, keepdims=True)
    sx = xc.max(axis=1, keepdims=True)
    s = jnp.concatenate([sm, sx], axis=1)           # (B, 2, H, W)
    conv = jax.lax.conv_general_dilated(
        s, Wconv, window_strides=(1, 1), padding=((3, 3), (3, 3)),
        dimension_numbers=("NCHW", "OIHW", "NCHW"))
    scale = bn_gamma / jnp.sqrt(bn_var + eps)
    shift = bn_beta - bn_mean * scale
    a_s = jax.nn.sigmoid(conv * scale + shift)
    return xc * a_s


if __name__ == "__main__":
    B, C, H, W = 2, 16, 16, 16
    reduction = 4                    # CBAM default
    hidden = C // reduction

    key = jax.random.PRNGKey(0)
    kx, k1, k2, k3, k4, k5 = jax.random.split(key, 6)
    x = jax.random.normal(kx, (B, C, H, W), jnp.float32)

    # deterministic synthetic parameters (shapes per module __init__)
    W1 = jax.random.normal(k1, (hidden, C), jnp.float32) * 0.3   # Linear(C, C//r)
    b1 = jax.random.normal(k2, (hidden,), jnp.float32) * 0.1
    W2 = jax.random.normal(k3, (C, hidden), jnp.float32) * 0.3   # Linear(C//r, C)
    b2 = jax.random.normal(k4, (C,), jnp.float32) * 0.1
    Wconv = jax.random.normal(k5, (1, 2, 7, 7), jnp.float32) * 0.1  # Conv2d(2,1,7), bias=False
    bn_gamma = jnp.ones((1,), jnp.float32)
    bn_beta = jnp.zeros((1,), jnp.float32)
    bn_mean = jnp.zeros((1,), jnp.float32)
    bn_var = jnp.ones((1,), jnp.float32)

    out = cbam_forward(x, W1, b1, W2, b2, Wconv, bn_gamma, bn_beta, bn_mean, bn_var)
    out = jax.block_until_ready(out)

    ref = cbam_reference(x, W1, b1, W2, b2, Wconv, bn_gamma, bn_beta, bn_mean, bn_var)
    assert out.shape == (B, C, H, W)
    assert jnp.allclose(out, ref, rtol=1e-4, atol=1e-4), float(jnp.max(jnp.abs(out - ref)))

    print("KERNEL_OK")
</pallas_src>

<mosaic_0001>
module attributes {stable_mosaic.version = 11 : i64} {
  func.func @cbam_kernel(%arg0: i32, %arg1: memref<1x16x256xf32, #tpu.memory_space<vmem>>, %arg2: memref<16x4xf32, #tpu.memory_space<vmem>>, %arg3: memref<1x4xf32, #tpu.memory_space<vmem>>, %arg4: memref<16x4xf32, #tpu.memory_space<vmem>>, %arg5: memref<16x1xf32, #tpu.memory_space<vmem>>, %arg6: memref<1x256xf32, #tpu.memory_space<vmem>>, %arg7: memref<16x8xf32, #tpu.memory_space<vmem>>, %arg8: memref<2xf32, #tpu.memory_space<smem>>, %arg9: memref<1x16x256xf32, #tpu.memory_space<vmem>>, %arg10: memref<2x1x640xf32, #tpu.memory_space<vmem>>, %arg11: memref<16x384xf32, #tpu.memory_space<vmem>>) attributes {dimension_semantics = [#tpu.dimension_semantics<parallel>], iteration_bounds = array<i64: 2>, scalar_prefetch = 0 : i64, scratch_operands = 2 : i64, tpu.core_type = #tpu.core_type<tc>, window_params = [{transform_indices = @transform_0, window_bounds = array<i64: 1, 16, 256>}, {pipeline_mode = #tpu.pipeline_mode<synchronous>, transform_indices = @transform_1, window_bounds = array<i64: 16, 4>}, {pipeline_mode = #tpu.pipeline_mode<synchronous>, transform_indices = @transform_2, window_bounds = array<i64: 1, 4>}, {pipeline_mode = #tpu.pipeline_mode<synchronous>, transform_indices = @transform_3, window_bounds = array<i64: 16, 4>}, {pipeline_mode = #tpu.pipeline_mode<synchronous>, transform_indices = @transform_4, window_bounds = array<i64: 16, 1>}, {pipeline_mode = #tpu.pipeline_mode<synchronous>, transform_indices = @transform_5, window_bounds = array<i64: 1, 256>}, {pipeline_mode = #tpu.pipeline_mode<synchronous>, transform_indices = @transform_6, window_bounds = array<i64: 16, 8>}, {transform_indices = @transform_7, window_bounds = array<i64: 2>}, {transform_indices = @transform_8, window_bounds = array<i64: 1, 16, 256>}]} {
    %cst = arith.constant 0.000000e+00 : f32
    %0 = vector.broadcast %cst : f32 to vector<2x1x640xf32>
    %c0 = arith.constant 0 : index
    %c0_0 = arith.constant 0 : index
    %c0_1 = arith.constant 0 : index
    %1 = vector.load %arg10[%c0, %c0_0, %c0_1] : memref<2x1x640xf32, #tpu.memory_space<vmem>>, vector<2x1x640xf32>
    tpu.vector_store %arg10[%c0, %c0_0, %c0_1], %0 {strides = array<i32>} : memref<2x1x640xf32, #tpu.memory_space<vmem>>, vector<2x1x640xf32>,
    %cst_2 = arith.constant 0.000000e+00 : f32
    %2 = vector.broadcast %cst_2 : f32 to vector<16x384xf32>
    %c0_3 = arith.constant 0 : index
    %c0_4 = arith.constant 0 : index
    %3 = vector.load %arg11[%c0_3, %c0_4] : memref<16x384xf32, #tpu.memory_space<vmem>>, vector<16x384xf32>
    tpu.vector_store %arg11[%c0_3, %c0_4], %2 {strides = array<i32>} : memref<16x384xf32, #tpu.memory_space<vmem>>, vector<16x384xf32>,
    %c0_5 = arith.constant 0 : index
    %c0_6 = arith.constant 0 : index
    %4 = vector.load %arg6[%c0_5, %c0_6] : memref<1x256xf32, #tpu.memory_space<vmem>>, vector<1x256xf32>
    %c0_7 = arith.constant 0 : index
    %c0_8 = arith.constant 0 : index
    %5 = vector.load %arg2[%c0_7, %c0_8] : memref<16x4xf32, #tpu.memory_space<vmem>>, vector<16x4xf32>
    %c0_9 = arith.constant 0 : index
    %c0_10 = arith.constant 0 : index
    %6 = vector.load %arg3[%c0_9, %c0_10] : memref<1x4xf32, #tpu.memory_space<vmem>>, vector<1x4xf32>
    %c0_11 = arith.constant 0 : index
    %c0_12 = arith.constant 0 : index
    %7 = vector.load %arg4[%c0_11, %c0_12] : memref<16x4xf32, #tpu.memory_space<vmem>>, vector<16x4xf32>
    %c0_13 = arith.constant 0 : index
    %c0_14 = arith.constant 0 : index
    %8 = vector.load %arg5[%c0_13, %c0_14] : memref<16x1xf32, #tpu.memory_space<vmem>>, vector<16x1xf32>
    %c0_15 = arith.constant 0 : index
    %9 = memref.load %arg8[%c0_15] : memref<2xf32, #tpu.memory_space<smem>>
    %c1 = arith.constant 1 : index
    %10 = memref.load %arg8[%c1] : memref<2xf32, #tpu.memory_space<smem>>
    %c0_16 = arith.constant 0 : index
    %c0_17 = arith.constant 0 : index
    %c0_18 = arith.constant 0 : index
    %11 = vector.load %arg1[%c0_16, %c0_17, %c0_18] : memref<1x16x256xf32, #tpu.memory_space<vmem>>, vector<1x16x256xf32>
    %12 = vector.shape_cast %11 : vector<1x16x256xf32> to vector<16x256xf32>
    %cst_19 = arith.constant dense<0.000000e+00> : vector<16xf32>
    %13 = vector.multi_reduction <add>, %12, %cst_19 [1] : vector<16x256xf32> to vector<16xf32>
    %14 = vector.shape_cast %13 : vector<16xf32> to vector<16x1xf32>
    %cst_20 = arith.constant 3.906250e-03 : f32
    %15 = vector.broadcast %cst_20 : f32 to vector<16x1xf32>
    %16 = arith.mulf %14, %15 : vector<16x1xf32>
    %cst_21 = arith.constant dense<0xFF800000> : vector<16xf32>
    %17 = vector.multi_reduction <maximumf>, %12, %cst_21 [1] : vector<16x256xf32> to vector<16xf32>
    %18 = vector.shape_cast %17 : vector<16xf32> to vector<16x1xf32>
    %19 = vector.broadcast %16 : vector<16x1xf32> to vector<16x4xf32>
    %20 = arith.mulf %5, %19 : vector<16x4xf32>
    %cst_22 = arith.constant dense<0.000000e+00> : vector<4xf32>
    %21 = vector.multi_reduction <add>, %20, %cst_22 [0] : vector<16x4xf32> to vector<4xf32>
    %22 = vector.shape_cast %21 : vector<4xf32> to vector<1x4xf32>
    %23 = arith.addf %22, %6 : vector<1x4xf32>
    %cst_23 = arith.constant 0.000000e+00 : f32
    %24 = vector.broadcast %cst_23 : f32 to vector<1x4xf32>
    %25 = arith.maximumf %23, %24 : vector<1x4xf32>
    %26 = vector.broadcast %25 : vector<1x4xf32> to vector<16x4xf32>
    %27 = arith.mulf %7, %26 : vector<16x4xf32>
    %cst_24 = arith.constant dense<0.000000e+00> : vector<16xf32>
    %28 = vector.multi_reduction <add>, %27, %cst_24 [1] : vector<16x4xf32> to vector<16xf32>
    %29 = vector.shape_cast %28 : vector<16xf32> to vector<16x1xf32>
    %30 = arith.addf %29, %8 : vector<16x1xf32>
    %31 = vector.broadcast %18 : vector<16x1xf32> to vector<16x4xf32>
    %32 = arith.mulf %5, %31 : vector<16x4xf32>
    %cst_25 = arith.constant dense<0.000000e+00> : vector<4xf32>
    %33 = vector.multi_reduction <add>, %32, %cst_25 [0] : vector<16x4xf32> to vector<4xf32>
    %34 = vector.shape_cast %33 : vector<4xf32> to vector<1x4xf32>
    %35 = arith.addf %34, %6 : vector<1x4xf32>
    %cst_26 = arith.constant 0.000000e+00 : f32
    %36 = vector.broadcast %cst_26 : f32 to vector<1x4xf32>
    %37 = arith.maximumf %35, %36 : vector<1x4xf32>
    %38 = vector.broadcast %37 : vector<1x4xf32> to vector<16x4xf32>
    %39 = arith.mulf %7, %38 : vector<16x4xf32>
    %cst_27 = arith.constant dense<0.000000e+00> : vector<16xf32>
    %40 = vector.multi_reduction <add>, %39, %cst_27 [1] : vector<16x4xf32> to vector<16xf32>
    %41 = vector.shape_cast %40 : vector<16xf32> to vector<16x1xf32>
    %42 = arith.addf %41, %8 : vector<16x1xf32>
    %43 = arith.addf %30, %42 : vector<16x1xf32>
    %cst_28 = arith.constant 0.000000e+00 : f32
    %44 = vector.broadcast %cst_28 : f32 to vector<16x1xf32>
    %45 = arith.subf %44, %43 : vector<16x1xf32>
    %46 = math.exp %45 : vector<16x1xf32>
    %cst_29 = arith.constant 1.000000e+00 : f32
    %47 = vector.broadcast %cst_29 : f32 to vector<16x1xf32>
    %48 = arith.addf %47, %46 : vector<16x1xf32>
    %cst_30 = arith.constant 1.000000e+00 : f32
    %49 = vector.broadcast %cst_30 : f32 to vector<16x1xf32>
    %50 = arith.divf %49, %48 : vector<16x1xf32>
    %51 = vector.broadcast %50 : vector<16x1xf32> to vector<16x256xf32>
    %52 = arith.mulf %12, %51 : vector<16x256xf32>
    %cst_31 = arith.constant dense<0.000000e+00> : vector<256xf32>
    %53 = vector.multi_reduction <add>, %52, %cst_31 [0] : vector<16x256xf32> to vector<256xf32>
    %54 = vector.shape_cast %53 : vector<256xf32> to vector<1x256xf32>
    %cst_32 = arith.constant 6.250000e-02 : f32
    %55 = vector.broadcast %cst_32 : f32 to vector<1x256xf32>
    %56 = arith.mulf %54, %55 : vector<1x256xf32>
    %cst_33 = arith.constant dense<0xFF800000> : vector<256xf32>
    %57 = vector.multi_reduction <maximumf>, %52, %cst_33 [0] : vector<16x256xf32> to vector<256xf32>
    %58 = vector.shape_cast %57 : vector<256xf32> to vector<1x256xf32>
    %c0_34 = arith.constant 0 : index
    %c0_35 = arith.constant 0 : index
    %c128 = arith.constant 128 : index
    %59 = vector.load %arg10[%c0_34, %c0_35, %c128] : memref<2x1x640xf32, #tpu.memory_space<vmem>>, vector<1x1x256xf32>
    %60 = vector.shape_cast %59 : vector<1x1x256xf32> to vector<1x256xf32>
    %61 = vector.shape_cast %56 : vector<1x256xf32> to vector<1x1x256xf32>
    tpu.vector_store %arg10[%c0_34, %c0_35, %c128], %61 {strides = array<i32>} : memref<2x1x640xf32, #tpu.memory_space<vmem>>, vector<1x1x256xf32>,
    %c1_36 = arith.constant 1 : index
    %c0_37 = arith.constant 0 : index
    %c128_38 = arith.constant 128 : index
    %62 = vector.load %arg10[%c1_36, %c0_37, %c128_38] : memref<2x1x640xf32, #tpu.memory_space<vmem>>, vector<1x1x256xf32>
    %63 = vector.shape_cast %62 : vector<1x1x256xf32> to vector<1x256xf32>
    %64 = vector.shape_cast %58 : vector<1x256xf32> to vector<1x1x256xf32>
    tpu.vector_store %arg10[%c1_36, %c0_37, %c128_38], %64 {strides = array<i32>} : memref<2x1x640xf32, #tpu.memory_space<vmem>>, vector<1x1x256xf32>,
    %c0_39 = arith.constant 0 : index
    %c0_40 = arith.constant 0 : index
    %c77 = arith.constant 77 : index
    %65 = vector.load %arg10[%c0_39, %c0_40, %c77] : memref<2x1x640xf32, #tpu.memory_space<vmem>>, vector<1x1x384xf32>
    %66 = vector.shape_cast %65 : vector<1x1x384xf32> to vector<1x384xf32>
    %c0_41 = arith.constant 0 : index
    %c0_42 = arith.constant 0 : index
    %67 = vector.load %arg11[%c0_41, %c0_42] : memref<16x384xf32, #tpu.memory_space<vmem>>, vector<1x384xf32>
    tpu.vector_store %arg11[%c0_41, %c0_42], %66 {strides = array<i32>} : memref<16x384xf32, #tpu.memory_space<vmem>>, vector<1x384xf32>,
    %c0_43 = arith.constant 0 : index
    %c0_44 = arith.constant 0 : index
    %c93 = arith.constant 93 : index
    %68 = vector.load %arg10[%c0_43, %c0_44, %c93] : memref<2x1x640xf32, #tpu.memory_space<vmem>>, vector<1x1x384xf32>
    %69 = vector.shape_cast %68 : vector<1x1x384xf32> to vector<1x384xf32>
    %c1_45 = arith.constant 1 : index
    %c0_46 = arith.constant 0 : index
    %70 = vector.load %arg11[%c1_45, %c0_46] : memref<16x384xf32, #tpu.memory_space<vmem>>, vector<1x384xf32>
    tpu.vector_store %arg11[%c1_45, %c0_46], %69 {strides = array<i32>} : memref<16x384xf32, #tpu.memory_space<vmem>>, vector<1x384xf32>,
    %c0_47 = arith.constant 0 : index
    %c0_48 = arith.constant 0 : index
    %c109 = arith.constant 109 : index
    %71 = vector.load %arg10[%c0_47, %c0_48, %c109] : memref<2x1x640xf32, #tpu.memory_space<vmem>>, vector<1x1x384xf32>
    %72 = vector.shape_cast %71 : vector<1x1x384xf32> to vector<1x384xf32>
    %c2 = arith.constant 2 : index
    %c0_49 = arith.constant 0 : index
    %73 = vector.load %arg11[%c2, %c0_49] : memref<16x384xf32, #tpu.memory_space<vmem>>, vector<1x384xf32>
    tpu.vector_store %arg11[%c2, %c0_49], %72 {strides = array<i32>} : memref<16x384xf32, #tpu.memory_space<vmem>>, vector<1x384xf32>,
    %c0_50 = arith.constant 0 : index
    %c0_51 = arith.constant 0 : index
    %c125 = arith.constant 125 : index
    %74 = vector.load %arg10[%c0_50, %c0_51, %c125] : memref<2x1x640xf32, #tpu.memory_space<vmem>>, vector<1x1x384xf32>
    %75 = vector.shape_cast %74 : vector<1x1x384xf32> to vector<1x384xf32>
    %c3 = arith.constant 3 : index
    %c0_52 = arith.constant 0 : index
    %76 = vector.load %arg11[%c3, %c0_52] : memref<16x384xf32, #tpu.memory_space<vmem>>, vector<1x384xf32>
    tpu.vector_store %arg11[%c3, %c0_52], %75 {strides = array<i32>} : memref<16x384xf32, #tpu.memory_space<vmem>>, vector<1x384xf32>,
    %c0_53 = arith.constant 0 : index
    %c0_54 = arith.constant 0 : index
    %c141 = arith.constant 141 : index
    %77 = vector.load %arg10[%c0_53, %c0_54, %c141] : memref<2x1x640xf32, #tpu.memory_space<vmem>>, vector<1x1x384xf32>
    %78 = vector.shape_cast %77 : vector<1x1x384xf32> to vector<1x384xf32>
    %c4 = arith.constant 4 : index
    %c0_55 = arith.constant 0 : index
    %79 = vector.load %arg11[%c4, %c0_55] : memref<16x384xf32, #tpu.memory_space<vmem>>, vector<1x384xf32>
    tpu.vector_store %arg11[%c4, %c0_55], %78 {strides = array<i32>} : memref<16x384xf32, #tpu.memory_space<vmem>>, vector<1x384xf32>,
    %c0_56 = arith.constant 0 : index
    %c0_57 = arith.constant 0 : index
    %c157 = arith.constant 157 : index
    %80 = vector.load %arg10[%c0_56, %c0_57, %c157] : memref<2x1x640xf32, #tpu.memory_space<vmem>>, vector<1x1x384xf32>
    %81 = vector.shape_cast %80 : vector<1x1x384xf32> to vector<1x384xf32>
    %c5 = arith.constant 5 : index
    %c0_58 = arith.constant 0 : index
    %82 = vector.load %arg11[%c5, %c0_58] : memref<16x384xf32, #tpu.memory_space<vmem>>, vector<1x384xf32>
    tpu.vector_store %arg11[%c5, %c0_58], %81 {strides = array<i32>} : memref<16x384xf32, #tpu.memory_space<vmem>>, vector<1x384xf32>,
    %c0_59 = arith.constant 0 : index
    %c0_60 = arith.constant 0 : index
    %c173 = arith.constant 173 : index
    %83 = vector.load %arg10[%c0_59, %c0_60, %c173] : memref<2x1x640xf32, #tpu.memory_space<vmem>>, vector<1x1x384xf32>
    %84 = vector.shape_cast %83 : vector<1x1x384xf32> to vector<1x384xf32>
    %c6 = arith.constant 6 : index
    %c0_61 = arith.constant 0 : index
    %85 = vector.load %arg11[%c6, %c0_61] : memref<16x384xf32, #tpu.memory_space<vmem>>, vector<1x384xf32>
    tpu.vector_store %arg11[%c6, %c0_61], %84 {strides = array<i32>} : memref<16x384xf32, #tpu.memory_space<vmem>>, vector<1x384xf32>,
    %c1_62 = arith.constant 1 : index
    %c0_63 = arith.constant 0 : index
    %c77_64 = arith.constant 77 : index
    %86 = vector.load %arg10[%c1_62, %c0_63, %c77_64] : memref<2x1x640xf32, #tpu.memory_space<vmem>>, vector<1x1x384xf32>
    %87 = vector.shape_cast %86 : vector<1x1x384xf32> to vector<1x384xf32>
    %c8 = arith.constant 8 : index
    %c0_65 = arith.constant 0 : index
    %88 = vector.load %arg11[%c8, %c0_65] : memref<16x384xf32, #tpu.memory_space<vmem>>, vector<1x384xf32>
    tpu.vector_store %arg11[%c8, %c0_65], %87 {strides = array<i32>} : memref<16x384xf32, #tpu.memory_space<vmem>>, vector<1x384xf32>,
    %c1_66 = arith.constant 1 : index
    %c0_67 = arith.constant 0 : index
    %c93_68 = arith.constant 93 : index
    %89 = vector.load %arg10[%c1_66, %c0_67, %c93_68] : memref<2x1x640xf32, #tpu.memory_space<vmem>>, vector<1x1x384xf32>
    %90 = vector.shape_cast %89 : vector<1x1x384xf32> to vector<1x384xf32>
    %c9 = arith.constant 9 : index
    %c0_69 = arith.constant 0 : index
    %91 = vector.load %arg11[%c9, %c0_69] : memref<16x384xf32, #tpu.memory_space<vmem>>, vector<1x384xf32>
    tpu.vector_store %arg11[%c9, %c0_69], %90 {strides = array<i32>} : memref<16x384xf32, #tpu.memory_space<vmem>>, vector<1x384xf32>,
    %c1_70 = arith.constant 1 : index
    %c0_71 = arith.constant 0 : index
    %c109_72 = arith.constant 109 : index
    %92 = vector.load %arg10[%c1_70, %c0_71, %c109_72] : memref<2x1x640xf32, #tpu.memory_space<vmem>>, vector<1x1x384xf32>
    %93 = vector.shape_cast %92 : vector<1x1x384xf32> to vector<1x384xf32>
    %c10 = arith.constant 10 : index
    %c0_73 = arith.constant 0 : index
    %94 = vector.load %arg11[%c10, %c0_73] : memref<16x384xf32, #tpu.memory_space<vmem>>, vector<1x384xf32>
    tpu.vector_store %arg11[%c10, %c0_73], %93 {strides = array<i32>} : memref<16x384xf32, #tpu.memory_space<vmem>>, vector<1x384xf32>,
    %c1_74 = arith.constant 1 : index
    %c0_75 = arith.constant 0 : index
    %c125_76 = arith.constant 125 : index
    %95 = vector.load %arg10[%c1_74, %c0_75, %c125_76] : memref<2x1x640xf32, #tpu.memory_space<vmem>>, vector<1x1x384xf32>
    %96 = vector.shape_cast %95 : vector<1x1x384xf32> to vector<1x384xf32>
    %c11 = arith.constant 11 : index
    %c0_77 = arith.constant 0 : index
    %97 = vector.load %arg11[%c11, %c0_77] : memref<16x384xf32, #tpu.memory_space<vmem>>, vector<1x384xf32>
    tpu.vector_store %arg11[%c11, %c0_77], %96 {strides = array<i32>} : memref<16x384xf32, #tpu.memory_space<vmem>>, vector<1x384xf32>,
    %c1_78 = arith.constant 1 : index
    %c0_79 = arith.constant 0 : index
    %c141_80 = arith.constant 141 : index
    %98 = vector.load %arg10[%c1_78, %c0_79, %c141_80] : memref<2x1x640xf32, #tpu.memory_space<vmem>>, vector<1x1x384xf32>
    %99 = vector.shape_cast %98 : vector<1x1x384xf32> to vector<1x384xf32>
    %c12 = arith.constant 12 : index
    %c0_81 = arith.constant 0 : index
    %100 = vector.load %arg11[%c12, %c0_81] : memref<16x384xf32, #tpu.memory_space<vmem>>, vector<1x384xf32>
    tpu.vector_store %arg11[%c12, %c0_81], %99 {strides = array<i32>} : memref<16x384xf32, #tpu.memory_space<vmem>>, vector<1x384xf32>,
    %c1_82 = arith.constant 1 : index
    %c0_83 = arith.constant 0 : index
    %c157_84 = arith.constant 157 : index
    %101 = vector.load %arg10[%c1_82, %c0_83, %c157_84] : memref<2x1x640xf32, #tpu.memory_space<vmem>>, vector<1x1x384xf32>
    %102 = vector.shape_cast %101 : vector<1x1x384xf32> to vector<1x384xf32>
    %c13 = arith.constant 13 : index
    %c0_85 = arith.constant 0 : index
    %103 = vector.load %arg11[%c13, %c0_85] : memref<16x384xf32, #tpu.memory_space<vmem>>, vector<1x384xf32>
    tpu.vector_store %arg11[%c13, %c0_85], %102 {strides = array<i32>} : memref<16x384xf32, #tpu.memory_space<vmem>>, vector<1x384xf32>,
    %c1_86 = arith.constant 1 : index
    %c0_87 = arith.constant 0 : index
    %c173_88 = arith.constant 173 : index
    %104 = vector.load %arg10[%c1_86, %c0_87, %c173_88] : memref<2x1x640xf32, #tpu.memory_space<vmem>>, vector<1x1x384xf32>
    %105 = vector.shape_cast %104 : vector<1x1x384xf32> to vector<1x384xf32>
    %c14 = arith.constant 14 : index
    %c0_89 = arith.constant 0 : index
    %106 = vector.load %arg11[%c14, %c0_89] : memref<16x384xf32, #tpu.memory_space<vmem>>, vector<1x384xf32>
    tpu.vector_store %arg11[%c14, %c0_89], %105 {strides = array<i32>} : memref<16x384xf32, #tpu.memory_space<vmem>>, vector<1x384xf32>,
    %cst_90 = arith.constant 0.000000e+00 : f32
    %107 = vector.broadcast %cst_90 : f32 to vector<1x256xf32>
    %c0_91 = arith.constant 0 : index
    %c0_92 = arith.constant 0 : index
    %108 = vector.load %arg11[%c0_91, %c0_92] : memref<16x384xf32, #tpu.memory_space<vmem>>, vector<16x256xf32>
    %c0_93 = arith.constant 0 : index
    %c0_94 = arith.constant 0 : index
    %109 = vector.load %arg7[%c0_93, %c0_94] : memref<16x8xf32, #tpu.memory_space<vmem>>, vector<16x1xf32>
    %110 = vector.broadcast %109 : vector<16x1xf32> to vector<16x256xf32>
    %111 = arith.mulf %108, %110 : vector<16x256xf32>
    %cst_95 = arith.constant dense<0.000000e+00> : vector<256xf32>
    %112 = vector.multi_reduction <add>, %111, %cst_95 [0] : vector<16x256xf32> to vector<256xf32>
    %113 = vector.shape_cast %112 : vector<256xf32> to vector<1x256xf32>
    %cst_96 = arith.constant 3.000000e+00 : f32
    %114 = vector.broadcast %cst_96 : f32 to vector<1x256xf32>
    %115 = arith.cmpf oge, %4, %114 : vector<1x256xf32>
    %cst_97 = arith.constant 1.900000e+01 : f32
    %116 = vector.broadcast %cst_97 : f32 to vector<1x256xf32>
    %117 = arith.cmpf olt, %4, %116 : vector<1x256xf32>
    %118 = arith.andi %115, %117 : vector<1x256xi1>
    %cst_98 = arith.constant 0.000000e+00 : f32
    %119 = vector.broadcast %cst_98 : f32 to vector<1x256xf32>
    %120 = arith.select %118, %113, %119 : vector<1x256xi1>, vector<1x256xf32>
    %121 = arith.addf %107, %120 : vector<1x256xf32>
    %c0_99 = arith.constant 0 : index
    %c1_100 = arith.constant 1 : index
    %122 = vector.load %arg11[%c0_99, %c1_100] : memref<16x384xf32, #tpu.memory_space<vmem>>, vector<16x256xf32>
    %c0_101 = arith.constant 0 : index
    %c1_102 = arith.constant 1 : index
    %123 = vector.load %arg7[%c0_101, %c1_102] : memref<16x8xf32, #tpu.memory_space<vmem>>, vector<16x1xf32>
    %124 = vector.broadcast %123 : vector<16x1xf32> to vector<16x256xf32>
    %125 = arith.mulf %122, %124 : vector<16x256xf32>
    %cst_103 = arith.constant dense<0.000000e+00> : vector<256xf32>
    %126 = vector.multi_reduction <add>, %125, %cst_103 [0] : vector<16x256xf32> to vector<256xf32>
    %127 = vector.shape_cast %126 : vector<256xf32> to vector<1x256xf32>
    %cst_104 = arith.constant 2.000000e+00 : f32
    %128 = vector.broadcast %cst_104 : f32 to vector<1x256xf32>
    %129 = arith.cmpf oge, %4, %128 : vector<1x256xf32>
    %cst_105 = arith.constant 1.800000e+01 : f32
    %130 = vector.broadcast %cst_105 : f32 to vector<1x256xf32>
    %131 = arith.cmpf olt, %4, %130 : vector<1x256xf32>
    %132 = arith.andi %129, %131 : vector<1x256xi1>
    %cst_106 = arith.constant 0.000000e+00 : f32
    %133 = vector.broadcast %cst_106 : f32 to vector<1x256xf32>
    %134 = arith.select %132, %127, %133 : vector<1x256xi1>, vector<1x256xf32>
    %135 = arith.addf %121, %134 : vector<1x256xf32>
    %c0_107 = arith.constant 0 : index
    %c2_108 = arith.constant 2 : index
    %136 = vector.load %arg11[%c0_107, %c2_108] : memref<16x384xf32, #tpu.memory_space<vmem>>, vector<16x256xf32>
    %c0_109 = arith.constant 0 : index
    %c2_110 = arith.constant 2 : index
    %137 = vector.load %arg7[%c0_109, %c2_110] : memref<16x8xf32, #tpu.memory_space<vmem>>, vector<16x1xf32>
    %138 = vector.broadcast %137 : vector<16x1xf32> to vector<16x256xf32>
    %139 = arith.mulf %136, %138 : vector<16x256xf32>
    %cst_111 = arith.constant dense<0.000000e+00> : vector<256xf32>
    %140 = vector.multi_reduction <add>, %139, %cst_111 [0] : vector<16x256xf32> to vector<256xf32>
    %141 = vector.shape_cast %140 : vector<256xf32> to vector<1x256xf32>
    %cst_112 = arith.constant 1.000000e+00 : f32
    %142 = vector.broadcast %cst_112 : f32 to vector<1x256xf32>
    %143 = arith.cmpf oge, %4, %142 : vector<1x256xf32>
    %cst_113 = arith.constant 1.700000e+01 : f32
    %144 = vector.broadcast %cst_113 : f32 to vector<1x256xf32>
    %145 = arith.cmpf olt, %4, %144 : vector<1x256xf32>
    %146 = arith.andi %143, %145 : vector<1x256xi1>
    %cst_114 = arith.constant 0.000000e+00 : f32
    %147 = vector.broadcast %cst_114 : f32 to vector<1x256xf32>
    %148 = arith.select %146, %141, %147 : vector<1x256xi1>, vector<1x256xf32>
    %149 = arith.addf %135, %148 : vector<1x256xf32>
    %c0_115 = arith.constant 0 : index
    %c3_116 = arith.constant 3 : index
    %150 = vector.load %arg11[%c0_115, %c3_116] : memref<16x384xf32, #tpu.memory_space<vmem>>, vector<16x256xf32>
    %c0_117 = arith.constant 0 : index
    %c3_118 = arith.constant 3 : index
    %151 = vector.load %arg7[%c0_117, %c3_118] : memref<16x8xf32, #tpu.memory_space<vmem>>, vector<16x1xf32>
    %152 = vector.broadcast %151 : vector<16x1xf32> to vector<16x256xf32>
    %153 = arith.mulf %150, %152 : vector<16x256xf32>
    %cst_119 = arith.constant dense<0.000000e+00> : vector<256xf32>
    %154 = vector.multi_reduction <add>, %153, %cst_119 [0] : vector<16x256xf32> to vector<256xf32>
    %155 = vector.shape_cast %154 : vector<256xf32> to vector<1x256xf32>
    %156 = arith.addf %149, %155 : vector<1x256xf32>
    %c0_120 = arith.constant 0 : index
    %c4_121 = arith.constant 4 : index
    %157 = vector.load %arg11[%c0_120, %c4_121] : memref<16x384xf32, #tpu.memory_space<vmem>>, vector<16x256xf32>
    %c0_122 = arith.constant 0 : index
    %c4_123 = arith.constant 4 : index
    %158 = vector.load %arg7[%c0_122, %c4_123] : memref<16x8xf32, #tpu.memory_space<vmem>>, vector<16x1xf32>
    %159 = vector.broadcast %158 : vector<16x1xf32> to vector<16x256xf32>
    %160 = arith.mulf %157, %159 : vector<16x256xf32>
    %cst_124 = arith.constant dense<0.000000e+00> : vector<256xf32>
    %161 = vector.multi_reduction <add>, %160, %cst_124 [0] : vector<16x256xf32> to vector<256xf32>
    %162 = vector.shape_cast %161 : vector<256xf32> to vector<1x256xf32>
    %cst_125 = arith.constant -1.000000e+00 : f32
    %163 = vector.broadcast %cst_125 : f32 to vector<1x256xf32>
    %164 = arith.cmpf oge, %4, %163 : vector<1x256xf32>
    %cst_126 = arith.constant 1.500000e+01 : f32
    %165 = vector.broadcast %cst_126 : f32 to vector<1x256xf32>
    %166 = arith.cmpf olt, %4, %165 : vector<1x256xf32>
    %167 = arith.andi %164, %166 : vector<1x256xi1>
    %cst_127 = arith.constant 0.000000e+00 : f32
    %168 = vector.broadcast %cst_127 : f32 to vector<1x256xf32>
    %169 = arith.select %167, %162, %168 : vector<1x256xi1>, vector<1x256xf32>
    %170 = arith.addf %156, %169 : vector<1x256xf32>
    %c0_128 = arith.constant 0 : index
    %c5_129 = arith.constant 5 : index
    %171 = vector.load %arg11[%c0_128, %c5_129] : memref<16x384xf32, #tpu.memory_space<vmem>>, vector<16x256xf32>
    %c0_130 = arith.constant 0 : index
    %c5_131 = arith.constant 5 : index
    %172 = vector.load %arg7[%c0_130, %c5_131] : memref<16x8xf32, #tpu.memory_space<vmem>>, vector<16x1xf32>
    %173 = vector.broadcast %172 : vector<16x1xf32> to vector<16x256xf32>
    %174 = arith.mulf %171, %173 : vector<16x256xf32>
    %cst_132 = arith.constant dense<0.000000e+00> : vector<256xf32>
    %175 = vector.multi_reduction <add>, %174, %cst_132 [0] : vector<16x256xf32> to vector<256xf32>
    %176 = vector.shape_cast %175 : vector<256xf32> to vector<1x256xf32>
    %cst_133 = arith.constant -2.000000e+00 : f32
    %177 = vector.broadcast %cst_133 : f32 to vector<1x256xf32>
    %178 = arith.cmpf oge, %4, %177 : vector<1x256xf32>
    %cst_134 = arith.constant 1.400000e+01 : f32
    %179 = vector.broadcast %cst_134 : f32 to vector<1x256xf32>
    %180 = arith.cmpf olt, %4, %179 : vector<1x256xf32>
    %181 = arith.andi %178, %180 : vector<1x256xi1>
    %cst_135 = arith.constant 0.000000e+00 : f32
    %182 = vector.broadcast %cst_135 : f32 to vector<1x256xf32>
    %183 = arith.select %181, %176, %182 : vector<1x256xi1>, vector<1x256xf32>
    %184 = arith.addf %170, %183 : vector<1x256xf32>
    %c0_136 = arith.constant 0 : index
    %c6_137 = arith.constant 6 : index
    %185 = vector.load %arg11[%c0_136, %c6_137] : memref<16x384xf32, #tpu.memory_space<vmem>>, vector<16x256xf32>
    %c0_138 = arith.constant 0 : index
    %c6_139 = arith.constant 6 : index
    %186 = vector.load %arg7[%c0_138, %c6_139] : memref<16x8xf32, #tpu.memory_space<vmem>>, vector<16x1xf32>
    %187 = vector.broadcast %186 : vector<16x1xf32> to vector<16x256xf32>
    %188 = arith.mulf %185, %187 : vector<16x256xf32>
    %cst_140 = arith.constant dense<0.000000e+00> : vector<256xf32>
    %189 = vector.multi_reduction <add>, %188, %cst_140 [0] : vector<16x256xf32> to vector<256xf32>
    %190 = vector.shape_cast %189 : vector<256xf32> to vector<1x256xf32>
    %cst_141 = arith.constant -3.000000e+00 : f32
    %191 = vector.broadcast %cst_141 : f32 to vector<1x256xf32>
    %192 = arith.cmpf oge, %4, %191 : vector<1x256xf32>
    %cst_142 = arith.constant 1.300000e+01 : f32
    %193 = vector.broadcast %cst_142 : f32 to vector<1x256xf32>
    %194 = arith.cmpf olt, %4, %193 : vector<1x256xf32>
    %195 = arith.andi %192, %194 : vector<1x256xi1>
    %cst_143 = arith.constant 0.000000e+00 : f32
    %196 = vector.broadcast %cst_143 : f32 to vector<1x256xf32>
    %197 = arith.select %195, %190, %196 : vector<1x256xi1>, vector<1x256xf32>
    %198 = arith.addf %184, %197 : vector<1x256xf32>
    %199 = vector.broadcast %9 : f32 to vector<1x256xf32>
    %200 = arith.mulf %198, %199 : vector<1x256xf32>
    %201 = vector.broadcast %10 : f32 to vector<1x256xf32>
    %202 = arith.addf %200, %201 : vector<1x256xf32>
    %cst_144 = arith.constant 0.000000e+00 : f32
    %203 = vector.broadcast %cst_144 : f32 to vector<1x256xf32>
    %204 = arith.subf %203, %202 : vector<1x256xf32>
    %205 = math.exp %204 : vector<1x256xf32>
    %cst_145 = arith.constant 1.000000e+00 : f32
    %206 = vector.broadcast %cst_145 : f32 to vector<1x256xf32>
    %207 = arith.addf %206, %205 : vector<1x256xf32>
    %cst_146 = arith.constant 1.000000e+00 : f32
    %208 = vector.broadcast %cst_146 : f32 to vector<1x256xf32>
    %209 = arith.divf %208, %207 : vector<1x256xf32>
    %210 = vector.broadcast %209 : vector<1x256xf32> to vector<16x256xf32>
    %211 = arith.mulf %52, %210 : vector<16x256xf32>
    %c0_147 = arith.constant 0 : index
    %c0_148 = arith.constant 0 : index
    %c0_149 = arith.constant 0 : index
    %212 = vector.load %arg9[%c0_147, %c0_148, %c0_149] : memref<1x16x256xf32, #tpu.memory_space<vmem>>, vector<1x16x256xf32>
    %213 = vector.shape_cast %212 : vector<1x16x256xf32> to vector<16x256xf32>
    %214 = vector.shape_cast %211 : vector<16x256xf32> to vector<1x16x256xf32>
    tpu.vector_store %arg9[%c0_147, %c0_148, %c0_149], %214 {strides = array<i32>} : memref<1x16x256xf32, #tpu.memory_space<vmem>>, vector<1x16x256xf32>,
    return
  }
  func.func @transform_0(%arg0: i32) -> (i32, i32, i32) {
    %c0_i32 = arith.constant 0 : i32
    %c0_i32_0 = arith.constant 0 : i32
    %c0_i32_1 = arith.constant 0 : i32
    return %arg0, %c0_i32, %c0_i32_0 : i32, i32, i32
  }
  func.func @transform_1(%arg0: i32) -> (i32, i32) {
    %c0_i32 = arith.constant 0 : i32
    %c0_i32_0 = arith.constant 0 : i32
    %c0_i32_1 = arith.constant 0 : i32
    return %c0_i32, %c0_i32_0 : i32, i32
  }
  func.func @transform_2(%arg0: i32) -> (i32, i32) {
    %c0_i32 = arith.constant 0 : i32
    %c0_i32_0 = arith.constant 0 : i32
    %c0_i32_1 = arith.constant 0 : i32
    return %c0_i32, %c0_i32_0 : i32, i32
  }
  func.func @transform_3(%arg0: i32) -> (i32, i32) {
    %c0_i32 = arith.constant 0 : i32
    %c0_i32_0 = arith.constant 0 : i32
    %c0_i32_1 = arith.constant 0 : i32
    return %c0_i32, %c0_i32_0 : i32, i32
  }
  func.func @transform_4(%arg0: i32) -> (i32, i32) {
    %c0_i32 = arith.constant 0 : i32
    %c0_i32_0 = arith.constant 0 : i32
    %c0_i32_1 = arith.constant 0 : i32
    return %c0_i32, %c0_i32_0 : i32, i32
  }
  func.func @transform_5(%arg0: i32) -> (i32, i32) {
    %c0_i32 = arith.constant 0 : i32
    %c0_i32_0 = arith.constant 0 : i32
    %c0_i32_1 = arith.constant 0 : i32
    return %c0_i32, %c0_i32_0 : i32, i32
  }
  func.func @transform_6(%arg0: i32) -> (i32, i32) {
    %c0_i32 = arith.constant 0 : i32
    %c0_i32_0 = arith.constant 0 : i32
    %c0_i32_1 = arith.constant 0 : i32
    return %c0_i32, %c0_i32_0 : i32, i32
  }
  func.func @transform_7(%arg0: i32) -> i32 {
    %c0_i32 = arith.constant 0 : i32
    %c0_i32_0 = arith.constant 0 : i32
    return %c0_i32 : i32
  }
  func.func @transform_8(%arg0: i32) -> (i32, i32, i32) {
    %c0_i32 = arith.constant 0 : i32
    %c0_i32_0 = arith.constant 0 : i32
    %c0_i32_1 = arith.constant 0 : i32
    return %arg0, %c0_i32, %c0_i32_0 : i32, i32, i32
  }
}

</mosaic_0001>

<llo_original>
// kernel: cbam_forward.1
$region0: #{cbam_forward.1}
  #allocation0 [shape = 'u32[]', space=smem, size = 0x4, offset = 0x4, fixed_abs, tag = 'smem constant byte address 0x4 - core index']
  #allocation1 [shape = 'u32[72,128]{1,0:T(1,128)}', space=vmem, size = 0x9000, scoped, tag = 'internal scratch']
  #allocation2 [shape = 'f32[2,1,640]{2,1,0:T(1,128)}', space=vmem, size = 0x1400, scoped, tag = 'scratch operand']
  #allocation3 [shape = 'f32[16,384]{1,0:T(8,128)}', space=vmem, size = 0x6000, scoped, tag = 'scratch operand']
  %s0 = inlined_call_operand.vmem [shape: f32[2,16,256], index: 0, kind: input, shape index: {}]
  %s1 = inlined_call_operand.vmem [shape: f32[16,4], index: 1, kind: input, shape index: {}]
  %s2 = inlined_call_operand.vmem [shape: f32[1,4], index: 2, kind: input, shape index: {}]
  %s3 = inlined_call_operand.vmem [shape: f32[16,4], index: 3, kind: input, shape index: {}]
  %s4 = inlined_call_operand.vmem [shape: f32[16,1], index: 4, kind: input, shape index: {}]
  %s5 = inlined_call_operand.vmem [shape: f32[1,256], index: 5, kind: input, shape index: {}]
  %s6 = inlined_call_operand.vmem [shape: f32[16,8], index: 6, kind: input, shape index: {}]
  %s7 = inlined_call_operand.vmem [shape: f32[2], index: 7, kind: input, shape index: {}]
  %s8 = inlined_call_operand.vmem [shape: f32[2,16,256], index: 8, kind: output, shape index: {}]
  %s9 = sld [smem:[#allocation0]]
  $region69: #{cbam_forward.1} parent=0
    _
  %s11 = ssub.s32 1, %s9
  %s12 = scalar_select 0, %s11, %s9
  $region1: #{cbam_forward.1} parent=0
    #allocation4 [shape = 'u8[512]{0}', space=smem, size = 0x200, scoped, tag = 'input window, operand 7, single buffered']
    #allocation5 [shape = 's32[2]{0}', space=sflag, size = 0x8, scoped, tag = 'scoped memory for cbam_forward.1']
    %13 = vsyncpa [#allocation5], 0
    loop: start=0, step=1, limit=4
    $region2: #{cbam_forward.1} parent=1 // loop_pre_header
      _
    $region3: #{cbam_forward.1} parent=1 // loop_header
      %s15 = sphi 0, %s19
      %p16 = scmp.ge.s32.totalorder %s15, 4
      %s25 = sphi 0, %s27
      %s28 = sphi 0, %s25
      %s29 = sphi 0, %s28
      %s45 = sphi 0, %s29
      %s49 = sphi 0, %s49
      %s51 = sphi 0, %s49
      %s52 = sphi 0, %s51
      %s66 = sphi 0, %s52
      %s70 = sphi 0, %s70
      %s72 = sphi 0, %s70
      %s73 = sphi 0, %s72
      %s87 = sphi 0, %s73
      %s91 = sphi 0, %s91
      %s93 = sphi 0, %s91
      %s94 = sphi 0, %s93
      %s108 = sphi 0, %s94
      %s112 = sphi 0, %s112
      %s114 = sphi 0, %s112
      %s115 = sphi 0, %s114
      %s129 = sphi 0, %s115
      %s133 = sphi 0, %s133
      %s135 = sphi 0, %s133
      %s136 = sphi 0, %s135
      %s150 = sphi 0, %s136
      %s154 = sphi 0, %s154
      %s156 = sphi 0, %s154
      %s157 = sphi 0, %s156
      %s171 = sphi 0, %s157
      %s175 = sphi 0, %s175
      %s177 = sphi 0, %s175
      %s178 = sphi 0, %s177
      %s192 = sphi 0, %s178
      %s198 = sphi 0, %s200
      %s201 = sphi 0, %s198
      %s202 = sphi 0, %s201
      %s218 = sphi 0, %s202
    $region4: #{cbam_forward.1} parent=1 // loop_header_branch
      %18 = sbr.rel (%p16) target = $region8
    $region5: #{cbam_forward.1} parent=1 // loop_body
      %s20 = ssub.s32 %s15, 1
      %s21 = ssub.s32 %s15, 2
      %s22 = sadd.s32 %s15, 1
      %s23 = ssub.s32 %s15, %s22
      %p24 = scmp.eq.s32.totalorder %s23, 0
      %s26 = sadd.s32 %s25, 1
      %s27 = scalar_select %p24, %s25, %s26
      %p30 = pneg %p24
      %p31 = scmp.eq.s32.totalorder %s15, 1
      %p32 = por %p30, %p31
      %p33 = scmp.ne.s32.totalorder %s25, %s28
      %p34 = scmp.eq.s32.totalorder %s15, 0
      %p35 = por %p33, %p34
      %p36 = scmp.ne.s32.totalorder %s25, %s28
      %p37 = scmp.eq.s32.totalorder %s20, 1
      %p38 = por %p36, %p37
      %p39 = scmp.ne.s32.totalorder %s28, %s29
      %p40 = scmp.eq.s32.totalorder %s20, 0
      %p41 = por %p39, %p40
      %p42 = scmp.ne.s32.totalorder %s28, %s29
      %p43 = scmp.eq.s32.totalorder %s21, 1
      %p44 = por %p42, %p43
      %p46 = scmp.ne.s32.totalorder %s29, %s45
      %p47 = scmp.eq.s32.totalorder %s21, 0
      %p48 = por %p46, %p47
      %s50 = sadd.s32 %s49, 1
      %p53 = scmp.eq.s32.totalorder %s15, 1
      %p54 = scmp.ne.s32.totalorder %s49, %s51
      %p55 = scmp.eq.s32.totalorder %s15, 0
      %p56 = por %p54, %p55
      %p57 = scmp.ne.s32.totalorder %s49, %s51
      %p58 = scmp.eq.s32.totalorder %s20, 1
      %p59 = por %p57, %p58
      %p60 = scmp.ne.s32.totalorder %s51, %s52
      %p61 = scmp.eq.s32.totalorder %s20, 0
      %p62 = por %p60, %p61
      %p63 = scmp.ne.s32.totalorder %s51, %s52
      %p64 = scmp.eq.s32.totalorder %s21, 1
      %p65 = por %p63, %p64
      %p67 = scmp.ne.s32.totalorder %s52, %s66
      %p68 = scmp.eq.s32.totalorder %s21, 0
      %p69 = por %p67, %p68
      %s71 = sadd.s32 %s70, 1
      %p74 = scmp.eq.s32.totalorder %s15, 1
      %p75 = scmp.ne.s32.totalorder %s70, %s72
      %p76 = scmp.eq.s32.totalorder %s15, 0
      %p77 = por %p75, %p76
      %p78 = scmp.ne.s32.totalorder %s70, %s72
      %p79 = scmp.eq.s32.totalorder %s20, 1
      %p80 = por %p78, %p79
      %p81 = scmp.ne.s32.totalorder %s72, %s73
      %p82 = scmp.eq.s32.totalorder %s20, 0
      %p83 = por %p81, %p82
      %p84 = scmp.ne.s32.totalorder %s72, %s73
      %p85 = scmp.eq.s32.totalorder %s21, 1
      %p86 = por %p84, %p85
      %p88 = scmp.ne.s32.totalorder %s73, %s87
      %p89 = scmp.eq.s32.totalorder %s21, 0
      %p90 = por %p88, %p89
      %s92 = sadd.s32 %s91, 1
      %p95 = scmp.eq.s32.totalorder %s15, 1
      %p96 = scmp.ne.s32.totalorder %s91, %s93
      %p97 = scmp.eq.s32.totalorder %s15, 0
      %p98 = por %p96, %p97
      %p99 = scmp.ne.s32.totalorder %s91, %s93
      %p100 = scmp.eq.s32.totalorder %s20, 1
      %p101 = por %p99, %p100
      %p102 = scmp.ne.s32.totalorder %s93, %s94
      %p103 = scmp.eq.s32.totalorder %s20, 0
      %p104 = por %p102, %p103
      %p105 = scmp.ne.s32.totalorder %s93, %s94
      %p106 = scmp.eq.s32.totalorder %s21, 1
      %p107 = por %p105, %p106
      %p109 = scmp.ne.s32.totalorder %s94, %s108
      %p110 = scmp.eq.s32.totalorder %s21, 0
      %p111 = por %p109, %p110
      %s113 = sadd.s32 %s112, 1
      %p116 = scmp.eq.s32.totalorder %s15, 1
      %p117 = scmp.ne.s32.totalorder %s112, %s114
      %p118 = scmp.eq.s32.totalorder %s15, 0
      %p119 = por %p117, %p118
      %p120 = scmp.ne.s32.totalorder %s112, %s114
      %p121 = scmp.eq.s32.totalorder %s20, 1
      %p122 = por %p120, %p121
      %p123 = scmp.ne.s32.totalorder %s114, %s115
      %p124 = scmp.eq.s32.totalorder %s20, 0
      %p125 = por %p123, %p124
      %p126 = scmp.ne.s32.totalorder %s114, %s115
      %p127 = scmp.eq.s32.totalorder %s21, 1
      %p128 = por %p126, %p127
      %p130 = scmp.ne.s32.totalorder %s115, %s129
      %p131 = scmp.eq.s32.totalorder %s21, 0
      %p132 = por %p130, %p131
      %s134 = sadd.s32 %s133, 1
      %p137 = scmp.eq.s32.totalorder %s15, 1
      %p138 = scmp.ne.s32.totalorder %s133, %s135
      %p139 = scmp.eq.s32.totalorder %s15, 0
      %p140 = por %p138, %p139
      %p141 = scmp.ne.s32.totalorder %s133, %s135
      %p142 = scmp.eq.s32.totalorder %s20, 1
      %p143 = por %p141, %p142
      %p144 = scmp.ne.s32.totalorder %s135, %s136
      %p145 = scmp.eq.s32.totalorder %s20, 0
      %p146 = por %p144, %p145
      %p147 = scmp.ne.s32.totalorder %s135, %s136
      %p148 = scmp.eq.s32.totalorder %s21, 1
      %p149 = por %p147, %p148
      %p151 = scmp.ne.s32.totalorder %s136, %s150
      %p152 = scmp.eq.s32.totalorder %s21, 0
      %p153 = por %p151, %p152
      %s155 = sadd.s32 %s154, 1
      %p158 = scmp.eq.s32.totalorder %s15, 1
      %p159 = scmp.ne.s32.totalorder %s154, %s156
      %p160 = scmp.eq.s32.totalorder %s15, 0
      %p161 = por %p159, %p160
      %p162 = scmp.ne.s32.totalorder %s154, %s156
      %p163 = scmp.eq.s32.totalorder %s20, 1
      %p164 = por %p162, %p163
      %p165 = scmp.ne.s32.totalorder %s156, %s157
      %p166 = scmp.eq.s32.totalorder %s20, 0
      %p167 = por %p165, %p166
      %p168 = scmp.ne.s32.totalorder %s156, %s157
      %p169 = scmp.eq.s32.totalorder %s21, 1
      %p170 = por %p168, %p169
      %p172 = scmp.ne.s32.totalorder %s157, %s171
      %p173 = scmp.eq.s32.totalorder %s21, 0
      %p174 = por %p172, %p173
      %s176 = sadd.s32 %s175, 1
      %p179 = scmp.eq.s32.totalorder %s15, 1
      %p180 = scmp.ne.s32.totalorder %s175, %s177
      %p181 = scmp.eq.s32.totalorder %s15, 0
      %p182 = por %p180, %p181
      %p183 = scmp.ne.s32.totalorder %s175, %s177
      %p184 = scmp.eq.s32.totalorder %s20, 1
      %p185 = por %p183, %p184
      %p186 = scmp.ne.s32.totalorder %s177, %s178
      %p187 = scmp.eq.s32.totalorder %s20, 0
      %p188 = por %p186, %p187
      %p189 = scmp.ne.s32.totalorder %s177, %s178
      %p190 = scmp.eq.s32.totalorder %s21, 1
      %p191 = por %p189, %p190
      %p193 = scmp.ne.s32.totalorder %s178, %s192
      %p194 = scmp.eq.s32.totalorder %s21, 0
      %p195 = por %p193, %p194
      %s196 = ssub.s32 %s15, %s22
      %p197 = scmp.eq.s32.totalorder %s196, 0
      %s199 = sadd.s32 %s198, 1
      %s200 = scalar_select %p197, %s198, %s199
      %p203 = pneg %p197
      %p204 = scmp.eq.s32.totalorder %s15, 1
      %p205 = por %p203, %p204
      %p206 = scmp.ne.s32.totalorder %s198, %s201
      %p207 = scmp.eq.s32.totalorder %s15, 0
      %p208 = por %p206, %p207
      %p209 = scmp.ne.s32.totalorder %s198, %s201
      %p210 = scmp.eq.s32.totalorder %s20, 1
      %p211 = por %p209, %p210
      %p212 = scmp.ne.s32.totalorder %s201, %s202
      %p213 = scmp.eq.s32.totalorder %s20, 0
      %p214 = por %p212, %p213
      %p215 = scmp.ne.s32.totalorder %s201, %s202
      %p216 = scmp.eq.s32.totalorder %s21, 1
      %p217 = por %p215, %p216
      %p219 = scmp.ne.s32.totalorder %s202, %s218
      %p220 = scmp.eq.s32.totalorder %s21, 0
      %p221 = por %p219, %p220
      %p222 = scmp.le.s32.totalorder 1, %s15
      %p223 = scmp.lt.s32.totalorder %s15, 3
      %p224 = pnand %p222, %p223
      %p225 = pneg %p224
      // Predicated region
      $region9: #{cbam_forward.1} parent=5 // pred_check
        _
      $region10: #{cbam_forward.1} parent=5 // pred_check_branch
        %227 = sbr.rel (%p224) target = $region12
      $region11: #{cbam_forward.1} parent=5 // pred_region
        %s228 = ssub.s32 %s15, 1
        // Predicated region
        $region13: #{cbam_forward.1} parent=11 // pred_check
          %p229 = pneg %p62
        $region14: #{cbam_forward.1} parent=11 // pred_check_branch
          %231 = sbr.rel (%p229) target = $region16
        $region15: #{cbam_forward.1} parent=11 // pred_region
          _
        $region16: #{cbam_forward.1} parent=11 // pred_fallthru
          _
        // Predicated region
        $region17: #{cbam_forward.1} parent=11 // pred_check
          %p232 = pneg %p83
        $region18: #{cbam_forward.1} parent=11 // pred_check_branch
          %234 = sbr.rel (%p232) target = $region20
        $region19: #{cbam_forward.1} parent=11 // pred_region
          _
        $region20: #{cbam_forward.1} parent=11 // pred_fallthru
          _
        // Predicated region
        $region21: #{cbam_forward.1} parent=11 // pred_check
          %p235 = pneg %p104
        $region22: #{cbam_forward.1} parent=11 // pred_check_branch
          %237 = sbr.rel (%p235) target = $region24
        $region23: #{cbam_forward.1} parent=11 // pred_region
          _
        $region24: #{cbam_forward.1} parent=11 // pred_fallthru
          _
        // Predicated region
        $region25: #{cbam_forward.1} parent=11 // pred_check
          %p238 = pneg %p125
        $region26: #{cbam_forward.1} parent=11 // pred_check_branch
          %240 = sbr.rel (%p238) target = $region28
        $region27: #{cbam_forward.1} parent=11 // pred_region
          _
        $region28: #{cbam_forward.1} parent=11 // pred_fallthru
          _
        // Predicated region
        $region29: #{cbam_forward.1} parent=11 // pred_check
          %p241 = pneg %p146
        $region30: #{cbam_forward.1} parent=11 // pred_check_branch
          %243 = sbr.rel (%p241) target = $region32
        $region31: #{cbam_forward.1} parent=11 // pred_region
          _
        $region32: #{cbam_forward.1} parent=11 // pred_fallthru
          _
        // Predicated region
        $region33: #{cbam_forward.1} parent=11 // pred_check
          %p244 = pneg %p167
        $region34: #{cbam_forward.1} parent=11 // pred_check_branch
          %246 = sbr.rel (%p244) target = $region36
        $region35: #{cbam_forward.1} parent=11 // pred_region
          _
        $region36: #{cbam_forward.1} parent=11 // pred_fallthru
          _
        // Predicated region
        $region37: #{cbam_forward.1} parent=11 // pred_check
          %p247 = pneg %p188
        $region38: #{cbam_forward.1} parent=11 // pred_check_branch
          %249 = sbr.rel (%p247) target = $region40
        $region39: #{cbam_forward.1} parent=11 // pred_region
          %251 = vsyncadd [#allocation5], 0
          %s253 = sshll.u32 %s7, 4
          %s254 = int_to_ptr.vmem [resolvable:$true] %s253
          %256 = dma.vmem_to_smem %s254, 16, [#allocation4], [#allocation5]
        $region40: #{cbam_forward.1} parent=11 // pred_fallthru
          _
      $region12: #{cbam_forward.1} parent=5 // pred_fallthru
        _
      %p257 = scmp.lt.s32.totalorder %s15, 2
      // Predicated region
      $region41: #{cbam_forward.1} parent=5 // pred_check
        %p258 = pneg %p257
      $region42: #{cbam_forward.1} parent=5 // pred_check_branch
        %260 = sbr.rel (%p258) target = $region44
      $region43: #{cbam_forward.1} parent=5 // pred_region
        // Predicated region
        $region45: #{cbam_forward.1} parent=43 // pred_check
          %p261 = pneg %p35
        $region46: #{cbam_forward.1} parent=43 // pred_check_branch
          %263 = sbr.rel (%p261) target = $region48
        $region47: #{cbam_forward.1} parent=43 // pred_region
          %p264 = scmp.lt.s32.totalorder %s15, 1
          %s265 = scalar_select %p264, %s15, 1
          %s266 = smul.addr %s265, 4
          %s267 = smul.addr %s266, 8
          %s268 = scalar_lea.vmem %s0, %s267
        $region48: #{cbam_forward.1} parent=43 // pred_fallthru
          _
      $region44: #{cbam_forward.1} parent=5 // pred_fallthru
        _
      %p269 = scmp.le.s32.totalorder 1, %s15
      %p270 = scmp.lt.s32.totalorder %s15, 3
      %p271 = pnand %p269, %p270
      %p272 = pneg %p271
      // Predicated region
      $region49: #{cbam_forward.1} parent=5 // pred_check
        _
      $region50: #{cbam_forward.1} parent=5 // pred_check_branch
        %274 = sbr.rel (%p271) target = $region52
      $region51: #{cbam_forward.1} parent=5 // pred_region
        %s275 = ssub.s32 %s15, 1
        // Predicated region
        $region53: #{cbam_forward.1} parent=51 // pred_check
          %p276 = pneg %p188
        $region54: #{cbam_forward.1} parent=51 // pred_check_branch
          %278 = sbr.rel (%p276) target = $region56
        $region55: #{cbam_forward.1} parent=51 // pred_region
          %280 = dma.done [#allocation5], 16
        $region56: #{cbam_forward.1} parent=51 // pred_fallthru
          _
        %281 = sfence
        %p282 = scmp.lt.s32.totalorder %s20, 1
        %s283 = scalar_select %p282, %s20, 1
        %s284 = smul.addr %s283, 4
        %s285 = smul.addr %s284, 8
        %s286 = scalar_lea.vmem %s0, %s285
        %p287 = pneg %p41
        %p288 = pneg %p38
        %p289 = pneg %p62
        %p290 = pneg %p59
        %p291 = pneg %p83
        %p292 = pneg %p80
        %p293 = pneg %p104
        %p294 = pneg %p101
        %p295 = pneg %p125
        %p296 = pneg %p122
        %p297 = pneg %p146
        %p298 = pneg %p143
        %p299 = pneg %p167
        %p300 = pneg %p164
        %p301 = pneg %p188
        %p302 = pneg %p185
        %p303 = pneg %p214
        %p304 = pneg %p211
        %p305 = scmp.lt.s32.totalorder %s20, 1
        %s306 = scalar_select %p305, %s20, 1
        %s307 = smul.addr %s306, 4
        %s308 = smul.addr %s307, 8
        %s309 = scalar_lea.vmem %s8, %s308
        %p310 = scmp.lt.s32.totalorder %s20, 1
        %s311 = scalar_select %p310, %s20, 1
        %s312 = smul.addr %s311, 4
        %s313 = smul.addr %s312, 8
        %s314 = scalar_lea.vmem %s0, %s313
        %p315 = scmp.lt.s32.totalorder %s20, 1
        %s316 = scalar_select %p315, %s20, 1
        %s317 = smul.addr %s316, 4
        %s318 = smul.addr %s317, 8
        %s319 = scalar_lea.vmem %s8, %s318
        %v320 = vlaneseq
        %vm321 = vcmp.ge.s32.totalorder %v320, 0
        %vm322 = vcmp.lt.s32.totalorder %v320, 640
        %vm323 = vmand %vm321, %vm322
        %324 = vst.msk [vmem:[#allocation2] sm:$0x1f] %vm323, 0.0
        %325 = vst.msk [vmem:[#allocation2 + $0x5] sm:$0x1f] %vm323, 0.0
        %326 = vst [vmem:[#allocation3] sm:$0xff] 0.0
        %327 = vst [vmem:[#allocation3 + $0x8] sm:$0xff] 0.0
        %328 = vst [vmem:[#allocation3 + $0x10] sm:$0xff] 0.0
        %329 = vst [vmem:[#allocation3 + $0x18] sm:$0xff] 0.0
        %330 = vst [vmem:[#allocation3 + $0x20] sm:$0xff] 0.0
        %331 = vst [vmem:[#allocation3 + $0x28] sm:$0xff] 0.0
        %v332 = vld [vmem:[%s5] sm:$0x3]
        %v333 = vld [vmem:[%s1] sm:$0xff]
        %v334 = vld [vmem:[%s1 + $0x8] sm:$0xff]
        %v335 = vld [vmem:[%s2] sm:$0x1]
        %v336 = vld [vmem:[%s3] sm:$0xff]
        %v337 = vld [vmem:[%s3 + $0x8] sm:$0xff]
        %v338 = vld [vmem:[%s4] sm:$0xff]
        %v339 = vld [vmem:[%s4 + $0x8] sm:$0xff]
        %s340 = sld [smem:[#allocation4]]
        %s341 = sld [smem:[#allocation4 + $0x1]]
        %v342 = vld [vmem:[%s314] sm:$0xff]
        %v343 = vld [vmem:[%s314 + $0x8] sm:$0xff]
        %v344 = vld [vmem:[%s314 + $0x10] sm:$0xff]
        %v345 = vld [vmem:[%s314 + $0x18] sm:$0xff]
        %v346 = vadd.f32 %v342, %v343
        %347 = vadd.xlane.f32.xlu0 %v346
        %v348 = vpop.xlane.xlu0 %347
        %v349 = vadd.f32 %v344, %v345
        %350 = vadd.xlane.f32.xlu0 %v349
        %v351 = vpop.xlane.xlu0 %350
        %v352 = vmul.f32 %v348, 0.00390625
        %v353 = vmul.f32 %v351, 0.00390625
        %v354 = vmax.f32 %v342, %v343
        %355 = vmax.xlane.f32.xlu0 %v354
        %v356 = vpop.xlane.xlu0 %355
        %v357 = vmax.f32 %v344, %v345
        %358 = vmax.xlane.f32.xlu0 %v357
        %v359 = vpop.xlane.xlu0 %358
        %v360 = vmul.f32 %v333, %v352
        %v361 = vmul.f32 %v334, %v353
        %vm362 = vcmask 31744
        %v363 = vsel %vm362, %v360, 0.0
        %v364 = vsel %vm362, %v361, 0.0
        %v365 = vadd.f32 %v363, %v364
        %v366 = vrot.slane %v365, 4
        %v367 = vadd.f32 %v365, %v366
        %v368 = vrot.slane %v367, 2
        %v369 = vadd.f32 %v367, %v368
        %v370 = vrot.slane %v369, 1
        %v371 = vadd.f32 %v369, %v370
        %v372 = vadd.f32 %v371, %v335
        %v373 = vmax.f32 %v372, 0.0
        %v374 = vperm.slane %v373, 0
        %v375 = vmul.f32 %v336, %v374
        %v376 = vmul.f32 %v337, %v374
        %v377 = vsel %vm362, %v375, 0.0
        %378 = vadd.xlane.f32.xlu0 %v377
        %v379 = vpop.xlane.xlu0 %378
        %v380 = vsel %vm362, %v376, 0.0
        %381 = vadd.xlane.f32.xlu0 %v380
        %v382 = vpop.xlane.xlu0 %381
        %v383 = vadd.f32 %v379, %v338
        %v384 = vadd.f32 %v382, %v339
        %v385 = vmul.f32 %v333, %v356
        %v386 = vmul.f32 %v334, %v359
        %v387 = vsel %vm362, %v385, 0.0
        %v388 = vsel %vm362, %v386, 0.0
        %v389 = vadd.f32 %v387, %v388
        %v390 = vrot.slane %v389, 4
        %v391 = vadd.f32 %v389, %v390
        %v392 = vrot.slane %v391, 2
        %v393 = vadd.f32 %v391, %v392
        %v394 = vrot.slane %v393, 1
        %v395 = vadd.f32 %v393, %v394
        %v396 = vadd.f32 %v395, %v335
        %v397 = vmax.f32 %v396, 0.0
        %v398 = vperm.slane %v397, 0
        %v399 = vmul.f32 %v336, %v398
        %v400 = vmul.f32 %v337, %v398
        %v401 = vsel %vm362, %v399, 0.0
        %402 = vadd.xlane.f32.xlu0 %v401
        %v403 = vpop.xlane.xlu0 %402
        %v404 = vsel %vm362, %v400, 0.0
        %405 = vadd.xlane.f32.xlu0 %v404
        %v406 = vpop.xlane.xlu0 %405
        %v407 = vadd.f32 %v403, %v338
        %v408 = vadd.f32 %v406, %v339
        %v409 = vadd.f32 %v383, %v407
        %v410 = vadd.f32 %v384, %v408
        %v411 = vsub.f32 0.0, %v409
        %v412 = vsub.f32 0.0, %v410
        %v413 = vmul.f32 %v411, 1.442695
        %v414 = vpow.pop %v413
        %v415 = vmul.f32 %v412, 1.442695
        %v416 = vpow.pop %v415
        %v417 = vadd.f32 %v414, 1.0
        %v418 = vadd.f32 %v416, 1.0
        %v419 = vrcp.pop %v417
        %v420 = vmul.f32 %v417, %v419
        %v421 = vsub.f32 1.0, %v420
        %v422 = vmul.f32 %v419, %v421
        %v423 = vadd.f32 %v419, %v422
        %vm424 = vweird.f32 %v417
        %vm425 = vweird.f32 %v419
        %vm426 = vmor %vm424, %vm425
        %v427 = vsel %vm426, %v419, %v423
        %v428 = vand.u32 2147483647, %v417
        %vm429 = vcmp.eq.f32.partialorder %v428, 8.507059e+37
        %v430 = vand.u32 %v417, 2147483648
        %v431 = vor.u32 1.1754944e-38, %v430
        %v432 = vsel %vm429, %v431, %v427
        %v433 = vmul.f32 1.0, %v432
        %v434 = vrcp.pop %v418
        %v435 = vmul.f32 %v418, %v434
        %v436 = vsub.f32 1.0, %v435
        %v437 = vmul.f32 %v434, %v436
        %v438 = vadd.f32 %v434, %v437
        %vm439 = vweird.f32 %v418
        %vm440 = vweird.f32 %v434
        %vm441 = vmor %vm439, %vm440
        %v442 = vsel %vm441, %v434, %v438
        %v443 = vand.u32 2147483647, %v418
        %vm444 = vcmp.eq.f32.partialorder %v443, 8.507059e+37
        %v445 = vand.u32 %v418, 2147483648
        %v446 = vor.u32 1.1754944e-38, %v445
        %v447 = vsel %vm444, %v446, %v442
        %v448 = vmul.f32 1.0, %v447
        %450 = vset.pattern.permute.xlu0 0
        %451 = vperm.xlu0 %450, %v433
        %v452 = vpop.permute.xlu0 %451
        %455 = vset.pattern.permute.xlu0 0
        %456 = vperm.xlu0 %455, %v448
        %v457 = vpop.permute.xlu0 %456
        %v459 = vmul.f32 %v342, %v452
        %v460 = vmul.f32 %v343, %v452
        %v461 = vmul.f32 %v344, %v457
        %v462 = vmul.f32 %v345, %v457
        %v463 = vadd.f32 %v459, %v461
        %v464 = vrot.slane %v463, 4
        %v465 = vadd.f32 %v463, %v464
        %v466 = vrot.slane %v465, 2
        %v467 = vadd.f32 %v465, %v466
        %v468 = vrot.slane %v467, 1
        %v469 = vadd.f32 %v467, %v468
        %v470 = vadd.f32 %v460, %v462
        %v471 = vrot.slane %v470, 4
        %v472 = vadd.f32 %v470, %v471
        %v473 = vrot.slane %v472, 2
        %v474 = vadd.f32 %v472, %v473
        %v475 = vrot.slane %v474, 1
        %v476 = vadd.f32 %v474, %v475
        %v477 = vmul.f32 %v469, 0.0625
        %v478 = vmul.f32 %v476, 0.0625
        %v479 = vmax.f32 %v459, %v461
        %v480 = vrot.slane %v479, 4
        %v481 = vmax.f32 %v479, %v480
        %v482 = vrot.slane %v481, 2
        %v483 = vmax.f32 %v481, %v482
        %v484 = vrot.slane %v483, 1
        %v485 = vmax.f32 %v483, %v484
        %v486 = vmax.f32 %v460, %v462
        %v487 = vrot.slane %v486, 4
        %v488 = vmax.f32 %v486, %v487
        %v489 = vrot.slane %v488, 2
        %v490 = vmax.f32 %v488, %v489
        %v491 = vrot.slane %v490, 1
        %v492 = vmax.f32 %v490, %v491
        %v495 = vrot.slane %v478, 7
        %vm496 = vcmask 1040384
        %v497 = vsel %vm496, %v477, %v495
        %vm499 = vcmp.lt.s32.totalorder %v320, 256
        %vm500 = vmand %vm321, %vm499
        %501 = vst.msk [vmem:[#allocation2 + $0x1] sm:$0x3] %vm500, %v497
        %v504 = vrot.slane %v492, 7
        %v505 = vsel %vm496, %v485, %v504
        %s507 = scalar_lea.vmem [#allocation2], 5
        %508 = vst.msk [vmem:[%s507 + $0x1] sm:$0x3] %vm500, %v505
        %v509 = vld [vmem:[#allocation2] sm:$0xf]
        %511 = vrot.lane.b32.xlu0 %v509, 51
        %v512 = vpop.permute.xlu0 %511
        %v513 = vrot.slane %v512, 1
        %vm514 = vcmask 416768
        %v515 = vsel %vm514, %v512, %v513
        %vm517 = vcmp.lt.s32.totalorder %v320, 384
        %vm518 = vmand %vm321, %vm517
        %519 = vst.msk [vmem:[#allocation3] ss:$8 sm:$0x7] %vm518, %v515
        %520 = vst.msk [vmem:[#allocation3] ss:$8 sm:$0x0] %vm518, %v515
        %v521 = vld [vmem:[#allocation2] sm:$0xf]
        %523 = vrot.lane.b32.xlu0 %v521, 35
        %v524 = vpop.permute.xlu0 %523
        %v525 = vrot.slane %v524, 1
        %vm526 = vcmask 285696
        %v527 = vsel %vm526, %v524, %v525
        %s529 = scalar_lea.vmem [#allocation3], 1
        %530 = vst.msk [vmem:[%s529] ss:$8 sm:$0x7] %vm518, %v527
        %531 = vst.msk [vmem:[%s529] ss:$8 sm:$0x0] %vm518, %v527
        %v532 = vld [vmem:[#allocation2] sm:$0xf]
        %534 = vrot.lane.b32.xlu0 %v532, 19
        %v535 = vpop.permute.xlu0 %534
        %v536 = vrot.slane %v535, 1
        %vm537 = vcmask 154624
        %v538 = vsel %vm537, %v535, %v536
        %s540 = scalar_lea.vmem [#allocation3], 2
        %541 = vst.msk [vmem:[%s540] ss:$8 sm:$0x7] %vm518, %v538
        %542 = vst.msk [vmem:[%s540] ss:$8 sm:$0x0] %vm518, %v538
        %v543 = vld [vmem:[#allocation2] sm:$0xf]
        %545 = vrot.lane.b32.xlu0 %v543, 3
        %v546 = vpop.permute.xlu0 %545
        %v547 = vrot.slane %v546, 1
        %vm548 = vcmask 23552
        %v549 = vsel %vm548, %v546, %v547
        %s551 = scalar_lea.vmem [#allocation3], 3
        %552 = vst.msk [vmem:[%s551] ss:$8 sm:$0x7] %vm518, %v549
        %553 = vst.msk [vmem:[%s551] ss:$8 sm:$0x0] %vm518, %v549
        %v554 = vld [vmem:[#allocation2 + $0x1] sm:$0xf]
        %556 = vrot.lane.b32.xlu0 %v554, 115
        %v557 = vpop.permute.xlu0 %556
        %v558 = vrot.slane %v557, 1
        %vm559 = vcmask 941056
        %v560 = vsel %vm559, %v557, %v558
        %s562 = scalar_lea.vmem [#allocation3], 4
        %563 = vst.msk [vmem:[%s562] ss:$8 sm:$0x7] %vm518, %v560
        %564 = vst.msk [vmem:[%s562] ss:$8 sm:$0x0] %vm518, %v560
        %v565 = vld [vmem:[#allocation2 + $0x1] sm:$0xf]
        %567 = vrot.lane.b32.xlu0 %v565, 99
        %v568 = vpop.permute.xlu0 %567
        %v569 = vrot.slane %v568, 1
        %vm570 = vcmask 809984
        %v571 = vsel %vm570, %v568, %v569
        %s573 = scalar_lea.vmem [#allocation3], 5
        %574 = vst.msk [vmem:[%s573] ss:$8 sm:$0x7] %vm518, %v571
        %575 = vst.msk [vmem:[%s573] ss:$8 sm:$0x0] %vm518, %v571
        %v576 = vld [vmem:[#allocation2 + $0x1] sm:$0xf]
        %578 = vrot.lane.b32.xlu0 %v576, 83
        %v579 = vpop.permute.xlu0 %578
        %v580 = vrot.slane %v579, 1
        %vm581 = vcmask 678912
        %v582 = vsel %vm581, %v579, %v580
        %s584 = scalar_lea.vmem [#allocation3], 6
        %585 = vst.msk [vmem:[%s584] ss:$8 sm:$0x7] %vm518, %v582
        %586 = vst.msk [vmem:[%s584] ss:$8 sm:$0x0] %vm518, %v582
        %v587 = vld [vmem:[%s507] sm:$0xf]
        %589 = vrot.lane.b32.xlu0 %v587, 51
        %v590 = vpop.permute.xlu0 %589
        %v591 = vrot.slane %v590, 1
        %v592 = vsel %vm514, %v590, %v591
        %s594 = scalar_lea.vmem [#allocation3], 24
        %595 = vst.msk [vmem:[%s594] ss:$8 sm:$0x7] %vm518, %v592
        %596 = vst.msk [vmem:[%s594] ss:$8 sm:$0x0] %vm518, %v592
        %v597 = vld [vmem:[%s507] sm:$0xf]
        %599 = vrot.lane.b32.xlu0 %v597, 35
        %v600 = vpop.permute.xlu0 %599
        %v601 = vrot.slane %v600, 1
        %v602 = vsel %vm526, %v600, %v601
        %s604 = scalar_lea.vmem [#allocation3], 25
        %605 = vst.msk [vmem:[%s604] ss:$8 sm:$0x7] %vm518, %v602
        %606 = vst.msk [vmem:[%s604] ss:$8 sm:$0x0] %vm518, %v602
        %v607 = vld [vmem:[%s507] sm:$0xf]
        %609 = vrot.lane.b32.xlu0 %v607, 19
        %v610 = vpop.permute.xlu0 %609
        %v611 = vrot.slane %v610, 1
        %v612 = vsel %vm537, %v610, %v611
        %s614 = scalar_lea.vmem [#allocation3], 26
        %615 = vst.msk [vmem:[%s614] ss:$8 sm:$0x7] %vm518, %v612
        %616 = vst.msk [vmem:[%s614] ss:$8 sm:$0x0] %vm518, %v612
        %v617 = vld [vmem:[%s507] sm:$0xf]
        %619 = vrot.lane.b32.xlu0 %v617, 3
        %v620 = vpop.permute.xlu0 %619
        %v621 = vrot.slane %v620, 1
        %v622 = vsel %vm548, %v620, %v621
        %s624 = scalar_lea.vmem [#allocation3], 27
        %625 = vst.msk [vmem:[%s624] ss:$8 sm:$0x7] %vm518, %v622
        %626 = vst.msk [vmem:[%s624] ss:$8 sm:$0x0] %vm518, %v622
        %v627 = vld [vmem:[%s507 + $0x1] sm:$0xf]
        %629 = vrot.lane.b32.xlu0 %v627, 115
        %v630 = vpop.permute.xlu0 %629
        %v631 = vrot.slane %v630, 1
        %v632 = vsel %vm559, %v630, %v631
        %s634 = scalar_lea.vmem [#allocation3], 28
        %635 = vst.msk [vmem:[%s634] ss:$8 sm:$0x7] %vm518, %v632
        %636 = vst.msk [vmem:[%s634] ss:$8 sm:$0x0] %vm518, %v632
        %v637 = vld [vmem:[%s507 + $0x1] sm:$0xf]
        %639 = vrot.lane.b32.xlu0 %v637, 99
        %v640 = vpop.permute.xlu0 %639
        %v641 = vrot.slane %v640, 1
        %v642 = vsel %vm570, %v640, %v641
        %s644 = scalar_lea.vmem [#allocation3], 29
        %645 = vst.msk [vmem:[%s644] ss:$8 sm:$0x7] %vm518, %v642
        %646 = vst.msk [vmem:[%s644] ss:$8 sm:$0x0] %vm518, %v642
        %v647 = vld [vmem:[%s507 + $0x1] sm:$0xf]
        %649 = vrot.lane.b32.xlu0 %v647, 83
        %v650 = vpop.permute.xlu0 %649
        %v651 = vrot.slane %v650, 1
        %v652 = vsel %vm581, %v650, %v651
        %s654 = scalar_lea.vmem [#allocation3], 30
        %655 = vst.msk [vmem:[%s654] ss:$8 sm:$0x7] %vm518, %v652
        %656 = vst.msk [vmem:[%s654] ss:$8 sm:$0x0] %vm518, %v652
        %v657 = vld [vmem:[#allocation3] sm:$0xff]
        %v658 = vld [vmem:[#allocation3 + $0x8] sm:$0xff]
        %v659 = vld [vmem:[#allocation3 + $0x18] sm:$0xff]
        %v660 = vld [vmem:[#allocation3 + $0x20] sm:$0xff]
        %v661 = vld [vmem:[%s6] sm:$0xff]
        %v662 = vld [vmem:[%s6 + $0x8] sm:$0xff]
        %664 = vset.pattern.permute.xlu0 0
        %665 = vperm.xlu0 %664, %v661
        %v666 = vpop.permute.xlu0 %665
        %669 = vset.pattern.permute.xlu0 0
        %670 = vperm.xlu0 %669, %v662
        %v671 = vpop.permute.xlu0 %670
        %v673 = vmul.f32 %v657, %v666
        %v674 = vmul.f32 %v658, %v666
        %v675 = vmul.f32 %v659, %v671
        %v676 = vmul.f32 %v660, %v671
        %v677 = vadd.f32 %v673, %v675
        %v678 = vrot.slane %v677, 4
        %v679 = vadd.f32 %v677, %v678
        %v680 = vrot.slane %v679, 2
        %v681 = vadd.f32 %v679, %v680
        %v682 = vrot.slane %v681, 1
        %v683 = vadd.f32 %v681, %v682
        %v684 = vadd.f32 %v674, %v676
        %v685 = vrot.slane %v684, 4
        %v686 = vadd.f32 %v684, %v685
        %v687 = vrot.slane %v686, 2
        %v688 = vadd.f32 %v686, %v687
        %v689 = vrot.slane %v688, 1
        %v690 = vadd.f32 %v688, %v689
        %vm691 = vcmp.ge.f32.partialorder %v332, 3.0
        %vm692 = vcmp.lt.f32.partialorder %v332, 19.0
        %vm693 = vmand %vm691, %vm692
        %v696 = vrot.slane %v690, 7
        %v697 = vsel %vm496, %v683, %v696
        %v699 = vsel %vm693, %v697, 0.0
        %v700 = vadd.f32 %v699, 0.0
        %v701 = vld [vmem:[#allocation3] sm:$0xff]
        %v702 = vld [vmem:[#allocation3 + $0x8] sm:$0xff]
        %v703 = vld [vmem:[#allocation3 + $0x10] sm:$0xff]
        %v704 = vld [vmem:[#allocation3 + $0x18] sm:$0xff]
        %v705 = vld [vmem:[#allocation3 + $0x20] sm:$0xff]
        %v706 = vld [vmem:[#allocation3 + $0x28] sm:$0xff]
        %707 = vset.pattern.permute.xlu0 1
        %708 = vperm.xlu0 %707, %v661
        %v709 = vpop.permute.xlu0 %708
        %711 = vset.pattern.permute.xlu0 1
        %712 = vperm.xlu0 %711, %v662
        %v713 = vpop.permute.xlu0 %712
        %v715 = vmul.f32 %v701, %v709
        %v716 = vmul.f32 %v702, %v709
        %v717 = vmul.f32 %v703, %v709
        %v718 = vmul.f32 %v704, %v713
        %v719 = vmul.f32 %v705, %v713
        %v720 = vmul.f32 %v706, %v713
        %vm721 = vcmask 1047560
        %v722 = vsel %vm721, %v715, 0.0
        %v723 = vsel %vm721, %v718, 0.0
        %v724 = vadd.f32 %v722, %v723
        %v725 = vrot.slane %v724, 4
        %v726 = vadd.f32 %v724, %v725
        %v727 = vrot.slane %v726, 2
        %v728 = vadd.f32 %v726, %v727
        %v729 = vrot.slane %v728, 1
        %v730 = vadd.f32 %v728, %v729
        %v731 = vadd.f32 %v716, %v719
        %v732 = vrot.slane %v731, 4
        %v733 = vadd.f32 %v731, %v732
        %v734 = vrot.slane %v733, 2
        %v735 = vadd.f32 %v733, %v734
        %v736 = vrot.slane %v735, 1
        %v737 = vadd.f32 %v735, %v736
        %vm738 = vcmask 7168
        %v739 = vsel %vm738, %v717, 0.0
        %v740 = vsel %vm738, %v720, 0.0
        %v741 = vadd.f32 %v739, %v740
        %v742 = vrot.slane %v741, 4
        %v743 = vadd.f32 %v741, %v742
        %v744 = vrot.slane %v743, 2
        %v745 = vadd.f32 %v743, %v744
        %v746 = vrot.slane %v745, 1
        %v747 = vadd.f32 %v745, %v746
        %vm748 = vcmp.ge.f32.partialorder %v332, 2.0
        %vm749 = vcmp.lt.f32.partialorder %v332, 18.0
        %vm750 = vmand %vm748, %vm749
        %v754 = vrot.slane %v737, 7
        %v755 = vrot.slane %v747, 6
        %v756 = vsel %vm496, %v730, %v754
        %vm757 = vcmask 1041408
        %v758 = vsel %vm757, %v756, %v755
        %759 = vrot.lane.b32.xlu0 %v758, 127
        %v760 = vpop.permute.xlu0 %759
        %v761 = vrot.slane %v760, 1
        %vm762 = vcmask 1039360
        %v763 = vsel %vm762, %v760, %v761
        %v765 = vsel %vm750, %v763, 0.0
        %v766 = vadd.f32 %v700, %v765
        %767 = vset.pattern.permute.xlu0 2
        %768 = vperm.xlu0 %767, %v661
        %v769 = vpop.permute.xlu0 %768
        %771 = vset.pattern.permute.xlu0 2
        %772 = vperm.xlu0 %771, %v662
        %v773 = vpop.permute.xlu0 %772
        %v775 = vmul.f32 %v701, %v769
        %v776 = vmul.f32 %v702, %v769
        %v777 = vmul.f32 %v703, %v769
        %v778 = vmul.f32 %v704, %v773
        %v779 = vmul.f32 %v705, %v773
        %v780 = vmul.f32 %v706, %v773
        %vm781 = vcmask 1047568
        %v782 = vsel %vm781, %v775, 0.0
        %v783 = vsel %vm781, %v778, 0.0
        %v784 = vadd.f32 %v782, %v783
        %v785 = vrot.slane %v784, 4
        %v786 = vadd.f32 %v784, %v785
        %v787 = vrot.slane %v786, 2
        %v788 = vadd.f32 %v786, %v787
        %v789 = vrot.slane %v788, 1
        %v790 = vadd.f32 %v788, %v789
        %v791 = vadd.f32 %v776, %v779
        %v792 = vrot.slane %v791, 4
        %v793 = vadd.f32 %v791, %v792
        %v794 = vrot.slane %v793, 2
        %v795 = vadd.f32 %v793, %v794
        %v796 = vrot.slane %v795, 1
        %v797 = vadd.f32 %v795, %v796
        %vm798 = vcmask 15360
        %v799 = vsel %vm798, %v777, 0.0
        %v800 = vsel %vm798, %v780, 0.0
        %v801 = vadd.f32 %v799, %v800
        %v802 = vrot.slane %v801, 4
        %v803 = vadd.f32 %v801, %v802
        %v804 = vrot.slane %v803, 2
        %v805 = vadd.f32 %v803, %v804
        %v806 = vrot.slane %v805, 1
        %v807 = vadd.f32 %v805, %v806
        %vm808 = vcmp.ge.f32.partialorder %v332, 1.0
        %vm809 = vcmp.lt.f32.partialorder %v332, 17.0
        %vm810 = vmand %vm808, %vm809
        %v814 = vrot.slane %v797, 7
        %v815 = vrot.slane %v807, 6
        %v816 = vsel %vm496, %v790, %v814
        %v817 = vsel %vm757, %v816, %v815
        %818 = vrot.lane.b32.xlu0 %v817, 126
        %v819 = vpop.permute.xlu0 %818
        %v820 = vrot.slane %v819, 1
        %vm821 = vcmask 1031168
        %v822 = vsel %vm821, %v819, %v820
        %v824 = vsel %vm810, %v822, 0.0
        %v825 = vadd.f32 %v766, %v824
        %826 = vset.pattern.permute.xlu0 3
        %827 = vperm.xlu0 %826, %v661
        %v828 = vpop.permute.xlu0 %827
        %830 = vset.pattern.permute.xlu0 3
        %831 = vperm.xlu0 %830, %v662
        %v832 = vpop.permute.xlu0 %831
        %v834 = vmul.f32 %v701, %v828
        %v835 = vmul.f32 %v702, %v828
        %v836 = vmul.f32 %v703, %v828
        %v837 = vmul.f32 %v704, %v832
        %v838 = vmul.f32 %v705, %v832
        %v839 = vmul.f32 %v706, %v832
        %vm840 = vcmask 1047576
        %v841 = vsel %vm840, %v834, 0.0
        %v842 = vsel %vm840, %v837, 0.0
        %v843 = vadd.f32 %v841, %v842
        %v844 = vrot.slane %v843, 4
        %v845 = vadd.f32 %v843, %v844
        %v846 = vrot.slane %v845, 2
        %v847 = vadd.f32 %v845, %v846
        %v848 = vrot.slane %v847, 1
        %v849 = vadd.f32 %v847, %v848
        %v850 = vadd.f32 %v835, %v838
        %v851 = vrot.slane %v850, 4
        %v852 = vadd.f32 %v850, %v851
        %v853 = vrot.slane %v852, 2
        %v854 = vadd.f32 %v852, %v853
        %v855 = vrot.slane %v854, 1
        %v856 = vadd.f32 %v854, %v855
        %v857 = vsel %vm548, %v836, 0.0
        %v858 = vsel %vm548, %v839, 0.0
        %v859 = vadd.f32 %v857, %v858
        %v860 = vrot.slane %v859, 4
        %v861 = vadd.f32 %v859, %v860
        %v862 = vrot.slane %v861, 2
        %v863 = vadd.f32 %v861, %v862
        %v864 = vrot.slane %v863, 1
        %v865 = vadd.f32 %v863, %v864
        %v869 = vrot.slane %v856, 7
        %v870 = vrot.slane %v865, 6
        %v871 = vsel %vm496, %v849, %v869
        %v872 = vsel %vm757, %v871, %v870
        %873 = vrot.lane.b32.xlu0 %v872, 125
        %v874 = vpop.permute.xlu0 %873
        %v875 = vrot.slane %v874, 1
        %vm876 = vcmask 1022976
        %v877 = vsel %vm876, %v874, %v875
        %v879 = vadd.f32 %v825, %v877
        %880 = vset.pattern.permute.xlu0 4
        %881 = vperm.xlu0 %880, %v661
        %v882 = vpop.permute.xlu0 %881
        %884 = vset.pattern.permute.xlu0 4
        %885 = vperm.xlu0 %884, %v662
        %v886 = vpop.permute.xlu0 %885
        %v888 = vmul.f32 %v701, %v882
        %v889 = vmul.f32 %v702, %v882
        %v890 = vmul.f32 %v703, %v882
        %v891 = vmul.f32 %v704, %v886
        %v892 = vmul.f32 %v705, %v886
        %v893 = vmul.f32 %v706, %v886
        %vm894 = vcmask 1047584
        %v895 = vsel %vm894, %v888, 0.0
        %v896 = vsel %vm894, %v891, 0.0
        %v897 = vadd.f32 %v895, %v896
        %v898 = vrot.slane %v897, 4
        %v899 = vadd.f32 %v897, %v898
        %v900 = vrot.slane %v899, 2
        %v901 = vadd.f32 %v899, %v900
        %v902 = vrot.slane %v901, 1
        %v903 = vadd.f32 %v901, %v902
        %v904 = vadd.f32 %v889, %v892
        %v905 = vrot.slane %v904, 4
        %v906 = vadd.f32 %v904, %v905
        %v907 = vrot.slane %v906, 2
        %v908 = vadd.f32 %v906, %v907
        %v909 = vrot.slane %v908, 1
        %v910 = vadd.f32 %v908, %v909
        %v911 = vsel %vm362, %v890, 0.0
        %v912 = vsel %vm362, %v893, 0.0
        %v913 = vadd.f32 %v911, %v912
        %v914 = vrot.slane %v913, 4
        %v915 = vadd.f32 %v913, %v914
        %v916 = vrot.slane %v915, 2
        %v917 = vadd.f32 %v915, %v916
        %v918 = vrot.slane %v917, 1
        %v919 = vadd.f32 %v917, %v918
        %vm920 = vcmp.ge.f32.partialorder %v332, -1.0
        %vm921 = vcmp.lt.f32.partialorder %v332, 15.0
        %vm922 = vmand %vm920, %vm921
        %v926 = vrot.slane %v910, 7
        %v927 = vrot.slane %v919, 6
        %v928 = vsel %vm496, %v903, %v926
        %v929 = vsel %vm757, %v928, %v927
        %930 = vrot.lane.b32.xlu0 %v929, 124
        %v931 = vpop.permute.xlu0 %930
        %v932 = vrot.slane %v931, 1
        %vm933 = vcmask 1014784
        %v934 = vsel %vm933, %v931, %v932
        %v936 = vsel %vm922, %v934, 0.0
        %v937 = vadd.f32 %v879, %v936
        %938 = vset.pattern.permute.xlu0 5
        %939 = vperm.xlu0 %938, %v661
        %v940 = vpop.permute.xlu0 %939
        %942 = vset.pattern.permute.xlu0 5
        %943 = vperm.xlu0 %942, %v662
        %v944 = vpop.permute.xlu0 %943
        %v946 = vmul.f32 %v701, %v940
        %v947 = vmul.f32 %v702, %v940
        %v948 = vmul.f32 %v703, %v940
        %v949 = vmul.f32 %v704, %v944
        %v950 = vmul.f32 %v705, %v944
        %v951 = vmul.f32 %v706, %v944
        %vm952 = vcmask 1047592
        %v953 = vsel %vm952, %v946, 0.0
        %v954 = vsel %vm952, %v949, 0.0
        %v955 = vadd.f32 %v953, %v954
        %v956 = vrot.slane %v955, 4
        %v957 = vadd.f32 %v955, %v956
        %v958 = vrot.slane %v957, 2
        %v959 = vadd.f32 %v957, %v958
        %v960 = vrot.slane %v959, 1
        %v961 = vadd.f32 %v959, %v960
        %v962 = vadd.f32 %v947, %v950
        %v963 = vrot.slane %v962, 4
        %v964 = vadd.f32 %v962, %v963
        %v965 = vrot.slane %v964, 2
        %v966 = vadd.f32 %v964, %v965
        %v967 = vrot.slane %v966, 1
        %v968 = vadd.f32 %v966, %v967
        %vm969 = vcmask 39936
        %v970 = vsel %vm969, %v948, 0.0
        %v971 = vsel %vm969, %v951, 0.0
        %v972 = vadd.f32 %v970, %v971
        %v973 = vrot.slane %v972, 4
        %v974 = vadd.f32 %v972, %v973
        %v975 = vrot.slane %v974, 2
        %v976 = vadd.f32 %v974, %v975
        %v977 = vrot.slane %v976, 1
        %v978 = vadd.f32 %v976, %v977
        %vm979 = vcmp.ge.f32.partialorder %v332, -2.0
        %vm980 = vcmp.lt.f32.partialorder %v332, 14.0
        %vm981 = vmand %vm979, %vm980
        %v985 = vrot.slane %v968, 7
        %v986 = vrot.slane %v978, 6
        %v987 = vsel %vm496, %v961, %v985
        %v988 = vsel %vm757, %v987, %v986
        %989 = vrot.lane.b32.xlu0 %v988, 123
        %v990 = vpop.permute.xlu0 %989
        %v991 = vrot.slane %v990, 1
        %vm992 = vcmask 1006592
        %v993 = vsel %vm992, %v990, %v991
        %v995 = vsel %vm981, %v993, 0.0
        %v996 = vadd.f32 %v937, %v995
        %997 = vset.pattern.permute.xlu0 6
        %998 = vperm.xlu0 %997, %v661
        %v999 = vpop.permute.xlu0 %998
        %1001 = vset.pattern.permute.xlu0 6
        %1002 = vperm.xlu0 %1001, %v662
        %v1003 = vpop.permute.xlu0 %1002
        %v1005 = vmul.f32 %v701, %v999
        %v1006 = vmul.f32 %v702, %v999
        %v1007 = vmul.f32 %v703, %v999
        %v1008 = vmul.f32 %v704, %v1003
        %v1009 = vmul.f32 %v705, %v1003
        %v1010 = vmul.f32 %v706, %v1003
        %vm1011 = vcmask 1047600
        %v1012 = vsel %vm1011, %v1005, 0.0
        %v1013 = vsel %vm1011, %v1008, 0.0
        %v1014 = vadd.f32 %v1012, %v1013
        %v1015 = vrot.slane %v1014, 4
        %v1016 = vadd.f32 %v1014, %v1015
        %v1017 = vrot.slane %v1016, 2
        %v1018 = vadd.f32 %v1016, %v1017
        %v1019 = vrot.slane %v1018, 1
        %v1020 = vadd.f32 %v1018, %v1019
        %v1021 = vadd.f32 %v1006, %v1009
        %v1022 = vrot.slane %v1021, 4
        %v1023 = vadd.f32 %v1021, %v1022
        %v1024 = vrot.slane %v1023, 2
        %v1025 = vadd.f32 %v1023, %v1024
        %v1026 = vrot.slane %v1025, 1
        %v1027 = vadd.f32 %v1025, %v1026
        %vm1028 = vcmask 48128
        %v1029 = vsel %vm1028, %v1007, 0.0
        %v1030 = vsel %vm1028, %v1010, 0.0
        %v1031 = vadd.f32 %v1029, %v1030
        %v1032 = vrot.slane %v1031, 4
        %v1033 = vadd.f32 %v1031, %v1032
        %v1034 = vrot.slane %v1033, 2
        %v1035 = vadd.f32 %v1033, %v1034
        %v1036 = vrot.slane %v1035, 1
        %v1037 = vadd.f32 %v1035, %v1036
        %vm1038 = vcmp.ge.f32.partialorder %v332, -3.0
        %vm1039 = vcmp.lt.f32.partialorder %v332, 13.0
        %vm1040 = vmand %vm1038, %vm1039
        %v1044 = vrot.slane %v1027, 7
        %v1045 = vrot.slane %v1037, 6
        %v1046 = vsel %vm496, %v1020, %v1044
        %v1047 = vsel %vm757, %v1046, %v1045
        %1048 = vrot.lane.b32.xlu0 %v1047, 122
        %v1049 = vpop.permute.xlu0 %1048
        %v1050 = vrot.slane %v1049, 1
        %vm1051 = vcmask 998400
        %v1052 = vsel %vm1051, %v1049, %v1050
        %v1054 = vsel %vm1040, %v1052, 0.0
        %v1055 = vadd.f32 %v996, %v1054
        %v1056 = vstv %s340
        %v1057 = vmul.f32 %v1055, %v1056
        %v1058 = vstv %s341
        %v1059 = vadd.f32 %v1057, %v1058
        %v1060 = vsub.f32 0.0, %v1059
        %v1061 = vmul.f32 %v1060, 1.442695
        %v1062 = vpow.pop %v1061
        %v1063 = vadd.f32 %v1062, 1.0
        %v1064 = vrcp.pop %v1063
        %v1065 = vmul.f32 %v1063, %v1064
        %v1066 = vsub.f32 1.0, %v1065
        %v1067 = vmul.f32 %v1064, %v1066
        %v1068 = vadd.f32 %v1064, %v1067
        %vm1069 = vweird.f32 %v1063
        %vm1070 = vweird.f32 %v1064
        %vm1071 = vmor %vm1069, %vm1070
        %v1072 = vsel %vm1071, %v1064, %v1068
        %v1073 = vand.u32 2147483647, %v1063
        %vm1074 = vcmp.eq.f32.partialorder %v1073, 8.507059e+37
        %v1075 = vand.u32 %v1063, 2147483648
        %v1076 = vor.u32 1.1754944e-38, %v1075
        %v1077 = vsel %vm1074, %v1076, %v1072
        %v1078 = vmul.f32 1.0, %v1077
        %v1080 = vperm.slane %v1078, 0
        %v1081 = vperm.slane %v1078, 1
        %v1084 = vmul.f32 %v459, %v1080
        %v1085 = vmul.f32 %v460, %v1081
        %v1086 = vmul.f32 %v461, %v1080
        %v1087 = vmul.f32 %v462, %v1081
        %1088 = vst [vmem:[%s319] sm:$0xff] %v1084
        %1089 = vst [vmem:[%s319 + $0x8] sm:$0xff] %v1085
        %1090 = vst [vmem:[%s319 + $0x10] sm:$0xff] %v1086
        %1091 = vst [vmem:[%s319 + $0x18] sm:$0xff] %v1087
        %p1092 = scmp.lt.s32.totalorder %s20, 1
        %s1093 = scalar_select %p1092, %s20, 1
        %s1094 = smul.addr %s1093, 4
        %s1095 = smul.addr %s1094, 8
        %s1096 = scalar_lea.vmem %s8, %s1095
        // Predicated region
        $region57: #{cbam_forward.1} parent=51 // pred_check
          %p1097 = pneg %p211
        $region58: #{cbam_forward.1} parent=51 // pred_check_branch
          %1099 = sbr.rel (%p1097) target = $region60
        $region59: #{cbam_forward.1} parent=51 // pred_region
          _
        $region60: #{cbam_forward.1} parent=51 // pred_fallthru
          _
      $region52: #{cbam_forward.1} parent=5 // pred_fallthru
        _
      %p1100 = scmp.le.s32.totalorder 2, %s15
      // Predicated region
      $region61: #{cbam_forward.1} parent=5 // pred_check
        %p1101 = pneg %p1100
      $region62: #{cbam_forward.1} parent=5 // pred_check_branch
        %1103 = sbr.rel (%p1101) target = $region64
      $region63: #{cbam_forward.1} parent=5 // pred_region
        %s1104 = ssub.s32 %s15, 2
        // Predicated region
        $region65: #{cbam_forward.1} parent=63 // pred_check
          %p1105 = pneg %p217
        $region66: #{cbam_forward.1} parent=63 // pred_check_branch
          %1107 = sbr.rel (%p1105) target = $region68
        $region67: #{cbam_forward.1} parent=63 // pred_region
          %p1108 = scmp.lt.s32.totalorder %s21, 1
          %s1109 = scalar_select %p1108, %s21, 1
          %s1110 = smul.addr %s1109, 4
          %s1111 = smul.addr %s1110, 8
          %s1112 = scalar_lea.vmem %s8, %s1111
        $region68: #{cbam_forward.1} parent=63 // pred_fallthru
          _
      $region64: #{cbam_forward.1} parent=5 // pred_fallthru
        _
    $region6: #{cbam_forward.1} parent=1 // loop_footer
      %s19 = sadd.s32 1, %s15
    $region7: #{cbam_forward.1} parent=1 // loop_footer_branch
      %14 = sbr.rel target = $region3
    $region8: #{cbam_forward.1} parent=1 // loop_exit
      _
    %1113 = vsyncpa [#allocation5], 1
    %s1114 = scalar_lea.sflag [#allocation5], 1
    %1115 = vsyncpa %s1114, 1

</llo_original>
